<compile_context>
chip_gen: v5e
topology: v5e:2x2
jax: 0.10.0
libtpu: 0.0.40
codegen_flags: <defaults>
</compile_context>

<pallas_src>
import itertools
import numpy as np
import jax
import jax.numpy as jnp
from jax.experimental import pallas as pl
from jax.experimental.pallas import tpu as pltpu

# ---------------------------------------------------------------- configuration
C = 8            # channel multiplicity
L = 4            # num_ell: dim of coupling irreps "1x0e + 1x1o"
E = 4            # num_elements
CORR = 3         # correlation
DEGS = (1, 3)    # 2l+1 for output irreps 0e, 1o
NZ = sum(DEGS)   # 4 stacked output components (0e | 1o x,y,z)
D_OUT = C * NZ   # 32, e3nn (mul, ir) flat width
# number of contraction paths (num_params) per (l_out, nu) for coupling irreps "0e+1o"
NPATHS = {0: {3: 4, 2: 2, 1: 1}, 1: {3: 6, 2: 2, 1: 1}}

# symmetric monomial basis (degree 1, 2, 3) over the L=4 coupling components
MONOS = ([(a,) for a in range(L)]
         + list(itertools.combinations_with_replacement(range(L), 2))
         + list(itertools.combinations_with_replacement(range(L), 3)))
NM = len(MONOS)          # 4 + 10 + 20 = 34
_MONO_IDX = {t: i for i, t in enumerate(MONOS)}
KDIM = NM * C            # 272  (matmul contraction dim)

BN_MAX = 512             # max nodes per grid step (node axis = lane axis)


def _scatter_mats():
    """Ordered-tuple coefficient -> symmetric monomial column (0/1 matrices)."""
    s1 = np.zeros((L, NM), np.float32)
    s2 = np.zeros((L * L, NM), np.float32)
    s3 = np.zeros((L ** 3, NM), np.float32)
    for a in range(L):
        s1[a, _MONO_IDX[(a,)]] = 1.0
        for b in range(L):
            s2[a * L + b, _MONO_IDX[tuple(sorted((a, b)))]] = 1.0
            for i in range(L):
                s3[(a * L + b) * L + i, _MONO_IDX[tuple(sorted((a, b, i)))]] = 1.0
    return s1, s2, s3


_S1, _S2, _S3 = _scatter_mats()


# ----------------------------------------------------------------------------- kernel
def _epbb_kernel(x_ref, attrs_ref, sc_ref, lhs_ref, out_ref):
    x = x_ref[...]                                   # [L, C, BN]   nodes on lanes
    xs = [x[i] for i in range(L)]                    # hoisted [C, BN] slices

    # 34 symmetric monomials of degree 1..3 per channel (order must match MONOS)
    mono = list(xs)
    pair = {}
    for a, b in itertools.combinations_with_replacement(range(L), 2):
        p = xs[a] * xs[b]
        pair[(a, b)] = p
        mono.append(p)
    for a, b, i in itertools.combinations_with_replacement(range(L), 3):
        mono.append(pair[(a, b)] * xs[i])
    m_all = jnp.concatenate(mono, axis=0)            # [NM*C, BN] rows (m, c), lane-dense

    # single MXU matmul: (U, path-weights, o3.Linear) pre-fused per element
    f = jnp.dot(lhs_ref[...], m_all,
                preferred_element_type=jnp.float32)  # [E*D_OUT, BN] rows (e, d)

    # per-node element selection (one-hot attrs) + skip connection, lane-dense store
    att = attrs_ref[...]                             # [E, BN]
    y = f[0:D_OUT] * att[0:1, :]
    for e in range(1, E):
        y = y + f[e * D_OUT:(e + 1) * D_OUT] * att[e:e + 1, :]
    out_ref[...] = y + sc_ref[...]


# --------------------------------------------------------------------- glue / wrapper
def _parity_lhs(u3, u2, u1, w3, w2, w1, wl):
    """Fuse U tables, path weights and the o3.Linear weight for one output parity.

    Returns LHS[e, z_local, w, m, c] such that the parity's linear output is
        y[n, w, z] = sum_{e,m,c} attrs[n,e] * LHS[e,z,w,m,c] * monomial_m(x[n,c,:]).
    """
    nz = u3.shape[0]
    g3 = jnp.einsum("zabik,ekc->ezcabi", u3, w3).reshape(E, nz, C, L ** 3)
    g2 = jnp.einsum("zabk,ekc->ezcab", u2, w2).reshape(E, nz, C, L * L)
    g1 = jnp.einsum("zak,ekc->ezca", u1, w1).reshape(E, nz, C, L)
    # symmetrize ordered-tuple coefficients onto the monomial basis
    coeff = (g1 @ jnp.asarray(_S1) + g2 @ jnp.asarray(_S2)
             + g3 @ jnp.asarray(_S3))                      # [E, nz, C, NM]
    # fold o3.Linear channel mixing (c -> w) and its 1/sqrt(C) normalization
    return jnp.einsum("ezcm,cw->ezwmc", coeff, wl) / np.sqrt(C)


def _build_lhs(params):
    l0 = _parity_lhs(params["U3_0"][None], params["U2_0"][None], params["U1_0"][None],
                     params["W3_0"], params["W2_0"], params["W1_0"], params["WL_0"])
    l1 = _parity_lhs(params["U3_1"], params["U2_1"], params["U1_1"],
                     params["W3_1"], params["W2_1"], params["W1_1"], params["WL_1"])
    # e3nn (mul, ir) flat output rows: 0e -> d = w ; 1o -> d = C + w*3 + z_local
    l0 = l0[:, 0]                                                 # [E, Cw, NM, Cc]
    l1 = jnp.transpose(l1, (0, 2, 1, 3, 4)).reshape(E, C * DEGS[1], NM, C)
    lhs = jnp.concatenate([l0, l1], axis=1)                       # [E, D_OUT, NM, C]
    return lhs.reshape(E * D_OUT, NM * C).astype(jnp.float32)     # cols (m, c)


def make_params(key):
    ks = jax.random.split(key, 14)
    p = {}
    # TODO(synk): the real U_nu buffers come from e3nn's U_matrix_real (generalized
    # Clebsch-Gordan reduction); here they are deterministic synthetic stand-ins with
    # the correct shapes / roles in the contraction equations.
    p["U3_0"] = jax.random.normal(ks[0], (L, L, L, NPATHS[0][3]), jnp.float32) * 0.25
    p["U2_0"] = jax.random.normal(ks[1], (L, L, NPATHS[0][2]), jnp.float32) * 0.25
    p["U1_0"] = jax.random.normal(ks[2], (L, NPATHS[0][1]), jnp.float32) * 0.25
    p["U3_1"] = jax.random.normal(ks[3], (3, L, L, L, NPATHS[1][3]), jnp.float32) * 0.25
    p["U2_1"] = jax.random.normal(ks[4], (3, L, L, NPATHS[1][2]), jnp.float32) * 0.25
    p["U1_1"] = jax.random.normal(ks[5], (3, L, NPATHS[1][1]), jnp.float32) * 0.25
    # Contraction weights: randn((num_elements, num_params, num_features)) / num_params
    p["W3_0"] = jax.random.normal(ks[6], (E, NPATHS[0][3], C), jnp.float32) / NPATHS[0][3]
    p["W2_0"] = jax.random.normal(ks[7], (E, NPATHS[0][2], C), jnp.float32) / NPATHS[0][2]
    p["W1_0"] = jax.random.normal(ks[8], (E, NPATHS[0][1], C), jnp.float32) / NPATHS[0][1]
    p["W3_1"] = jax.random.normal(ks[9], (E, NPATHS[1][3], C), jnp.float32) / NPATHS[1][3]
    p["W2_1"] = jax.random.normal(ks[10], (E, NPATHS[1][2], C), jnp.float32) / NPATHS[1][2]
    p["W1_1"] = jax.random.normal(ks[11], (E, NPATHS[1][1], C), jnp.float32) / NPATHS[1][1]
    # o3.Linear internal weights (one [C, C] mixing matrix per output irrep)
    p["WL_0"] = jax.random.normal(ks[12], (C, C), jnp.float32)
    p["WL_1"] = jax.random.normal(ks[13], (C, C), jnp.float32)
    return p


def equivariant_product_basis_block(node_feats, sc, node_attrs, params):
    n = node_feats.shape[0]

    # parameter plumbing: one fused per-element coefficient matrix [E*D_OUT, NM*C]
    lhs = _build_lhs(params)

    # layout plumbing: node axis -> lanes (last dim); output rows already in e3nn order
    x_t = jnp.transpose(node_feats, (2, 1, 0))            # [L, C, N]
    attrs_t = node_attrs.T                                 # [E, N]
    sc_t = sc.T                                            # [D_OUT, N]

    # node tile: as large as reasonable (amortize per-step overhead), shrink for small n;
    # pad the node axis with zeros (zero attrs -> zero contribution, nothing dropped).
    bn = min(BN_MAX, ((n + 127) // 128) * 128)
    n_pad = ((n + bn - 1) // bn) * bn
    if n_pad != n:
        pad = n_pad - n
        x_t = jnp.pad(x_t, ((0, 0), (0, 0), (0, pad)))
        attrs_t = jnp.pad(attrs_t, ((0, 0), (0, pad)))
        sc_t = jnp.pad(sc_t, ((0, 0), (0, pad)))

    out_t = pl.pallas_call(
        _epbb_kernel,
        out_shape=jax.ShapeDtypeStruct((D_OUT, n_pad), jnp.float32),
        grid=(n_pad // bn,),
        in_specs=[
            pl.BlockSpec((L, C, bn), lambda i: (0, 0, i)),          # node feats (transposed)
            pl.BlockSpec((E, bn), lambda i: (0, i)),                # node attrs (transposed)
            pl.BlockSpec((D_OUT, bn), lambda i: (0, i)),            # sc (transposed)
            pl.BlockSpec((E * D_OUT, NM * C), lambda i: (0, 0)),    # fused coefficient matrix
        ],
        out_specs=pl.BlockSpec((D_OUT, bn), lambda i: (0, i)),
        compiler_params=pltpu.CompilerParams(dimension_semantics=("parallel",)),
    )(x_t, attrs_t, sc_t, lhs)

    # back to the module's [N, D_OUT] layout (kernel rows are already e3nn (mul, ir) order)
    return out_t[:, :n].T


# ------------------------------------------------------------- plain-JAX reference
def reference_forward(node_feats, sc, node_attrs, params):
    """Mirrors the torch einsum graph of SymmetricContraction + o3.Linear + sc."""
    def contraction(u3, u2, u1, w3, w2, w1):
        out = jnp.einsum("zabik,ekc,nci,ne->nczab", u3, w3, node_feats, node_attrs)
        c2 = jnp.einsum("zabk,ekc,ne->nczab", u2, w2, node_attrs) + out
        out = jnp.einsum("nczab,ncb->ncza", c2, node_feats)
        c1 = jnp.einsum("zak,ekc,ne->ncza", u1, w1, node_attrs) + out
        out = jnp.einsum("ncza,nca->ncz", c1, node_feats)
        return out.reshape(out.shape[0], -1)

    f0 = contraction(params["U3_0"][None], params["U2_0"][None], params["U1_0"][None],
                     params["W3_0"], params["W2_0"], params["W1_0"])
    f1 = contraction(params["U3_1"], params["U2_1"], params["U1_1"],
                     params["W3_1"], params["W2_1"], params["W1_1"])

    def linear(f, wl, deg):
        x3 = f.reshape(f.shape[0], C, deg)
        y = jnp.einsum("ncm,cw->nwm", x3, wl) / np.sqrt(C)
        return y.reshape(f.shape[0], C * deg)

    y = jnp.concatenate([linear(f0, params["WL_0"], DEGS[0]),
                         linear(f1, params["WL_1"], DEGS[1])], axis=-1)
    return y + sc


if __name__ == "__main__":
    key = jax.random.PRNGKey(0)
    k_feat, k_elem, k_sc, k_par = jax.random.split(key, 4)
    n_nodes = 600    # not a multiple of the tile -> exercises padding; grid has 2 steps
    node_feats = jax.random.normal(k_feat, (n_nodes, C, L), dtype=jnp.float32)
    elements = jax.random.randint(k_elem, (n_nodes,), 0, E)
    node_attrs = jax.nn.one_hot(elements, E, dtype=jnp.float32)
    sc = jax.random.normal(k_sc, (n_nodes, D_OUT), dtype=jnp.float32)
    params = make_params(k_par)

    out = equivariant_product_basis_block(node_feats, sc, node_attrs, params)
    out = jax.block_until_ready(out)

    ref = reference_forward(node_feats, sc, node_attrs, params)
    assert out.shape == (n_nodes, D_OUT) and out.dtype == jnp.float32
    np.testing.assert_allclose(np.asarray(out), np.asarray(ref), rtol=2e-3, atol=2e-3)
    print("KERNEL_OK")
</pallas_src>

<mosaic_0001>
module attributes {stable_mosaic.version = 11 : i64} {
  func.func @_epbb_kernel(%arg0: i32, %arg1: memref<4x8x512xf32, #tpu.memory_space<vmem>>, %arg2: memref<4x512xf32, #tpu.memory_space<vmem>>, %arg3: memref<32x512xf32, #tpu.memory_space<vmem>>, %arg4: memref<128x272xf32, #tpu.memory_space<vmem>>, %arg5: memref<32x512xf32, #tpu.memory_space<vmem>>) attributes {dimension_semantics = [#tpu.dimension_semantics<parallel>], iteration_bounds = array<i64: 2>, scalar_prefetch = 0 : i64, scratch_operands = 0 : i64, tpu.core_type = #tpu.core_type<tc>, window_params = [{transform_indices = @transform_0, window_bounds = array<i64: 4, 8, 512>}, {transform_indices = @transform_1, window_bounds = array<i64: 4, 512>}, {transform_indices = @transform_2, window_bounds = array<i64: 32, 512>}, {pipeline_mode = #tpu.pipeline_mode<synchronous>, transform_indices = @transform_3, window_bounds = array<i64: 128, 272>}, {transform_indices = @transform_4, window_bounds = array<i64: 32, 512>}]} {
    %c0 = arith.constant 0 : index
    %c0_0 = arith.constant 0 : index
    %c0_1 = arith.constant 0 : index
    %0 = vector.load %arg1[%c0, %c0_0, %c0_1] : memref<4x8x512xf32, #tpu.memory_space<vmem>>, vector<4x8x512xf32>
    %1 = vector.extract_strided_slice %0 {offsets = [0, 0, 0], sizes = [1, 8, 512], strides = [1, 1, 1]} : vector<4x8x512xf32> to vector<1x8x512xf32>
    %2 = vector.shape_cast %1 : vector<1x8x512xf32> to vector<8x512xf32>
    %3 = vector.extract_strided_slice %0 {offsets = [1, 0, 0], sizes = [1, 8, 512], strides = [1, 1, 1]} : vector<4x8x512xf32> to vector<1x8x512xf32>
    %4 = vector.shape_cast %3 : vector<1x8x512xf32> to vector<8x512xf32>
    %5 = vector.extract_strided_slice %0 {offsets = [2, 0, 0], sizes = [1, 8, 512], strides = [1, 1, 1]} : vector<4x8x512xf32> to vector<1x8x512xf32>
    %6 = vector.shape_cast %5 : vector<1x8x512xf32> to vector<8x512xf32>
    %7 = vector.extract_strided_slice %0 {offsets = [3, 0, 0], sizes = [1, 8, 512], strides = [1, 1, 1]} : vector<4x8x512xf32> to vector<1x8x512xf32>
    %8 = vector.shape_cast %7 : vector<1x8x512xf32> to vector<8x512xf32>
    %9 = arith.mulf %2, %2 : vector<8x512xf32>
    %10 = arith.mulf %2, %4 : vector<8x512xf32>
    %11 = arith.mulf %2, %6 : vector<8x512xf32>
    %12 = arith.mulf %2, %8 : vector<8x512xf32>
    %13 = arith.mulf %4, %4 : vector<8x512xf32>
    %14 = arith.mulf %4, %6 : vector<8x512xf32>
    %15 = arith.mulf %4, %8 : vector<8x512xf32>
    %16 = arith.mulf %6, %6 : vector<8x512xf32>
    %17 = arith.mulf %6, %8 : vector<8x512xf32>
    %18 = arith.mulf %8, %8 : vector<8x512xf32>
    %19 = arith.mulf %9, %2 : vector<8x512xf32>
    %20 = arith.mulf %9, %4 : vector<8x512xf32>
    %21 = arith.mulf %9, %6 : vector<8x512xf32>
    %22 = arith.mulf %9, %8 : vector<8x512xf32>
    %23 = arith.mulf %10, %4 : vector<8x512xf32>
    %24 = arith.mulf %10, %6 : vector<8x512xf32>
    %25 = arith.mulf %10, %8 : vector<8x512xf32>
    %26 = arith.mulf %11, %6 : vector<8x512xf32>
    %27 = arith.mulf %11, %8 : vector<8x512xf32>
    %28 = arith.mulf %12, %8 : vector<8x512xf32>
    %29 = arith.mulf %13, %4 : vector<8x512xf32>
    %30 = arith.mulf %13, %6 : vector<8x512xf32>
    %31 = arith.mulf %13, %8 : vector<8x512xf32>
    %32 = arith.mulf %14, %6 : vector<8x512xf32>
    %33 = arith.mulf %14, %8 : vector<8x512xf32>
    %34 = arith.mulf %15, %8 : vector<8x512xf32>
    %35 = arith.mulf %16, %6 : vector<8x512xf32>
    %36 = arith.mulf %16, %8 : vector<8x512xf32>
    %37 = arith.mulf %17, %8 : vector<8x512xf32>
    %38 = arith.mulf %18, %8 : vector<8x512xf32>
    %39 = tpu.concatenate %2, %4, %6, %8, %9, %10, %11, %12, %13, %14, %15, %16, %17, %18, %19, %20 in 0 : vector<8x512xf32>, vector<8x512xf32>, vector<8x512xf32>, vector<8x512xf32>, vector<8x512xf32>, vector<8x512xf32>, vector<8x512xf32>, vector<8x512xf32>, vector<8x512xf32>, vector<8x512xf32>, vector<8x512xf32>, vector<8x512xf32>, vector<8x512xf32>, vector<8x512xf32>, vector<8x512xf32>, vector<8x512xf32> -> vector<128x512xf32>
    %40 = tpu.concatenate %21, %22, %23, %24, %25, %26, %27, %28, %29, %30, %31, %32, %33, %34, %35, %36 in 0 : vector<8x512xf32>, vector<8x512xf32>, vector<8x512xf32>, vector<8x512xf32>, vector<8x512xf32>, vector<8x512xf32>, vector<8x512xf32>, vector<8x512xf32>, vector<8x512xf32>, vector<8x512xf32>, vector<8x512xf32>, vector<8x512xf32>, vector<8x512xf32>, vector<8x512xf32>, vector<8x512xf32>, vector<8x512xf32> -> vector<128x512xf32>
    %41 = tpu.concatenate %37, %38 in 0 : vector<8x512xf32>, vector<8x512xf32> -> vector<16x512xf32>
    %42 = tpu.concatenate %39, %40, %41 in 0 : vector<128x512xf32>, vector<128x512xf32>, vector<16x512xf32> -> vector<272x512xf32>
    %c0_2 = arith.constant 0 : index
    %c0_3 = arith.constant 0 : index
    %43 = vector.load %arg4[%c0_2, %c0_3] : memref<128x272xf32, #tpu.memory_space<vmem>>, vector<128x272xf32>
    %cst = arith.constant dense<0.000000e+00> : vector<128x512xf32>
    %44 = tpu.matmul %43, %42, %cst {dimension_numbers = #tpu.dot_dimension_numbers<[1], [0], [0], [1], [0, 0, 1, 1], [], []>} : vector<128x272xf32>, vector<272x512xf32>, vector<128x512xf32> -> vector<128x512xf32>
    %c0_4 = arith.constant 0 : index
    %c0_5 = arith.constant 0 : index
    %45 = vector.load %arg2[%c0_4, %c0_5] : memref<4x512xf32, #tpu.memory_space<vmem>>, vector<4x512xf32>
    %46 = vector.extract_strided_slice %44 {offsets = [0, 0], sizes = [32, 512], strides = [1, 1]} : vector<128x512xf32> to vector<32x512xf32>
    %47 = vector.extract_strided_slice %45 {offsets = [0, 0], sizes = [1, 512], strides = [1, 1]} : vector<4x512xf32> to vector<1x512xf32>
    %48 = vector.broadcast %47 : vector<1x512xf32> to vector<32x512xf32>
    %49 = arith.mulf %46, %48 : vector<32x512xf32>
    %50 = vector.extract_strided_slice %44 {offsets = [32, 0], sizes = [32, 512], strides = [1, 1]} : vector<128x512xf32> to vector<32x512xf32>
    %51 = vector.extract_strided_slice %45 {offsets = [1, 0], sizes = [1, 512], strides = [1, 1]} : vector<4x512xf32> to vector<1x512xf32>
    %52 = vector.broadcast %51 : vector<1x512xf32> to vector<32x512xf32>
    %53 = arith.mulf %50, %52 : vector<32x512xf32>
    %54 = arith.addf %49, %53 : vector<32x512xf32>
    %55 = vector.extract_strided_slice %44 {offsets = [64, 0], sizes = [32, 512], strides = [1, 1]} : vector<128x512xf32> to vector<32x512xf32>
    %56 = vector.extract_strided_slice %45 {offsets = [2, 0], sizes = [1, 512], strides = [1, 1]} : vector<4x512xf32> to vector<1x512xf32>
    %57 = vector.broadcast %56 : vector<1x512xf32> to vector<32x512xf32>
    %58 = arith.mulf %55, %57 : vector<32x512xf32>
    %59 = arith.addf %54, %58 : vector<32x512xf32>
    %60 = vector.extract_strided_slice %44 {offsets = [96, 0], sizes = [32, 512], strides = [1, 1]} : vector<128x512xf32> to vector<32x512xf32>
    %61 = vector.extract_strided_slice %45 {offsets = [3, 0], sizes = [1, 512], strides = [1, 1]} : vector<4x512xf32> to vector<1x512xf32>
    %62 = vector.broadcast %61 : vector<1x512xf32> to vector<32x512xf32>
    %63 = arith.mulf %60, %62 : vector<32x512xf32>
    %64 = arith.addf %59, %63 : vector<32x512xf32>
    %c0_6 = arith.constant 0 : index
    %c0_7 = arith.constant 0 : index
    %65 = vector.load %arg3[%c0_6, %c0_7] : memref<32x512xf32, #tpu.memory_space<vmem>>, vector<32x512xf32>
    %66 = arith.addf %64, %65 : vector<32x512xf32>
    %c0_8 = arith.constant 0 : index
    %c0_9 = arith.constant 0 : index
    %67 = vector.load %arg5[%c0_8, %c0_9] : memref<32x512xf32, #tpu.memory_space<vmem>>, vector<32x512xf32>
    tpu.vector_store %arg5[%c0_8, %c0_9], %66 {strides = array<i32>} : memref<32x512xf32, #tpu.memory_space<vmem>>, vector<32x512xf32>,
    return
  }
  func.func @transform_0(%arg0: i32) -> (i32, i32, i32) {
    %c0_i32 = arith.constant 0 : i32
    %c0_i32_0 = arith.constant 0 : i32
    %c0_i32_1 = arith.constant 0 : i32
    return %c0_i32, %c0_i32_0, %arg0 : i32, i32, i32
  }
  func.func @transform_1(%arg0: i32) -> (i32, i32) {
    %c0_i32 = arith.constant 0 : i32
    %c0_i32_0 = arith.constant 0 : i32
    return %c0_i32, %arg0 : i32, i32
  }
  func.func @transform_2(%arg0: i32) -> (i32, i32) {
    %c0_i32 = arith.constant 0 : i32
    %c0_i32_0 = arith.constant 0 : i32
    return %c0_i32, %arg0 : i32, i32
  }
  func.func @transform_3(%arg0: i32) -> (i32, i32) {
    %c0_i32 = arith.constant 0 : i32
    %c0_i32_0 = arith.constant 0 : i32
    %c0_i32_1 = arith.constant 0 : i32
    return %c0_i32, %c0_i32_0 : i32, i32
  }
  func.func @transform_4(%arg0: i32) -> (i32, i32) {
    %c0_i32 = arith.constant 0 : i32
    %c0_i32_0 = arith.constant 0 : i32
    return %c0_i32, %arg0 : i32, i32
  }
}

</mosaic_0001>

<llo_original>
// kernel: tpu_custom_call.1
$region0: #{tpu_custom_call.1}
  #allocation0 [shape = 'u32[]', space=smem, size = 0x4, offset = 0x4, fixed_abs, tag = 'smem constant byte address 0x4 - core index']
  #allocation1 [shape = 'u32[72,128]{1,0:T(1,128)}', space=vmem, size = 0x9000, scoped, tag = 'internal scratch']
  %s0 = inlined_call_operand.vmem [shape: f32[4,8,1024], index: 0, kind: input, shape index: {}]
  %s1 = inlined_call_operand.vmem [shape: f32[4,1024], index: 1, kind: input, shape index: {}]
  %s2 = inlined_call_operand.vmem [shape: f32[32,1024], index: 2, kind: input, shape index: {}]
  %s3 = inlined_call_operand.vmem [shape: f32[128,272], index: 3, kind: input, shape index: {}]
  %s4 = inlined_call_operand.hbm [shape: f32[32,1024], index: 4, kind: output, shape index: {}]
  %s5 = sld [smem:[#allocation0]]
  $region95: #{tpu_custom_call.1} parent=0
    _
  %s7 = ssub.s32 1, %s5
  %s8 = scalar_select 0, %s7, %s5
  $region1: #{tpu_custom_call.1} parent=0
    #allocation2 [shape = 'u8[131072]{0}', space=vmem, size = 0x20000, scoped, tag = 'input window, operand 0']
    #allocation3 [shape = 'u8[131072]{0}', space=vmem, size = 0x20000, scoped, tag = 'input window, operand 2']
    #allocation4 [shape = 'u8[131072]{0}', space=vmem, size = 0x20000, scoped, tag = 'output window, operand 0']
    #allocation5 [shape = 's32[2]{0}', space=sflag, size = 0x8, scoped, tag = 'scoped memory for tpu_custom_call.1']
    %9 = vsyncpa [#allocation5], 0
    %s10 = scalar_lea.sflag [#allocation5], 1
    %11 = vsyncpa %s10, 0
    loop: start=0, step=1, limit=4
    $region2: #{tpu_custom_call.1} parent=1 // loop_pre_header
      _
    $region3: #{tpu_custom_call.1} parent=1 // loop_header
      %s13 = sphi 0, %s17
      %p14 = scmp.ge.s32.totalorder %s13, 4
      %s23 = sphi 0, %s25
      %s26 = sphi 0, %s23
      %s27 = sphi 0, %s26
      %s43 = sphi 0, %s27
      %s49 = sphi 0, %s51
      %s52 = sphi 0, %s49
      %s53 = sphi 0, %s52
      %s69 = sphi 0, %s53
      %s75 = sphi 0, %s77
      %s78 = sphi 0, %s75
      %s79 = sphi 0, %s78
      %s95 = sphi 0, %s79
      %s99 = sphi 0, %s99
      %s101 = sphi 0, %s99
      %s102 = sphi 0, %s101
      %s116 = sphi 0, %s102
      %s122 = sphi 0, %s124
      %s125 = sphi 0, %s122
      %s126 = sphi 0, %s125
      %s142 = sphi 0, %s126
    $region4: #{tpu_custom_call.1} parent=1 // loop_header_branch
      %16 = sbr.rel (%p14) target = $region8
    $region5: #{tpu_custom_call.1} parent=1 // loop_body
      %s18 = ssub.s32 %s13, 1
      %s19 = ssub.s32 %s13, 2
      %s20 = sadd.s32 %s13, 1
      %s21 = ssub.s32 %s13, %s20
      %p22 = scmp.eq.s32.totalorder %s21, 0
      %s24 = sadd.s32 %s23, 1
      %s25 = scalar_select %p22, %s23, %s24
      %p28 = pneg %p22
      %p29 = scmp.eq.s32.totalorder %s13, 1
      %p30 = por %p28, %p29
      %p31 = scmp.ne.s32.totalorder %s23, %s26
      %p32 = scmp.eq.s32.totalorder %s13, 0
      %p33 = por %p31, %p32
      %p34 = scmp.ne.s32.totalorder %s23, %s26
      %p35 = scmp.eq.s32.totalorder %s18, 1
      %p36 = por %p34, %p35
      %p37 = scmp.ne.s32.totalorder %s26, %s27
      %p38 = scmp.eq.s32.totalorder %s18, 0
      %p39 = por %p37, %p38
      %p40 = scmp.ne.s32.totalorder %s26, %s27
      %p41 = scmp.eq.s32.totalorder %s19, 1
      %p42 = por %p40, %p41
      %p44 = scmp.ne.s32.totalorder %s27, %s43
      %p45 = scmp.eq.s32.totalorder %s19, 0
      %p46 = por %p44, %p45
      %s47 = ssub.s32 %s13, %s20
      %p48 = scmp.eq.s32.totalorder %s47, 0
      %s50 = sadd.s32 %s49, 1
      %s51 = scalar_select %p48, %s49, %s50
      %p54 = pneg %p48
      %p55 = scmp.eq.s32.totalorder %s13, 1
      %p56 = por %p54, %p55
      %p57 = scmp.ne.s32.totalorder %s49, %s52
      %p58 = scmp.eq.s32.totalorder %s13, 0
      %p59 = por %p57, %p58
      %p60 = scmp.ne.s32.totalorder %s49, %s52
      %p61 = scmp.eq.s32.totalorder %s18, 1
      %p62 = por %p60, %p61
      %p63 = scmp.ne.s32.totalorder %s52, %s53
      %p64 = scmp.eq.s32.totalorder %s18, 0
      %p65 = por %p63, %p64
      %p66 = scmp.ne.s32.totalorder %s52, %s53
      %p67 = scmp.eq.s32.totalorder %s19, 1
      %p68 = por %p66, %p67
      %p70 = scmp.ne.s32.totalorder %s53, %s69
      %p71 = scmp.eq.s32.totalorder %s19, 0
      %p72 = por %p70, %p71
      %s73 = ssub.s32 %s13, %s20
      %p74 = scmp.eq.s32.totalorder %s73, 0
      %s76 = sadd.s32 %s75, 1
      %s77 = scalar_select %p74, %s75, %s76
      %p80 = pneg %p74
      %p81 = scmp.eq.s32.totalorder %s13, 1
      %p82 = por %p80, %p81
      %p83 = scmp.ne.s32.totalorder %s75, %s78
      %p84 = scmp.eq.s32.totalorder %s13, 0
      %p85 = por %p83, %p84
      %p86 = scmp.ne.s32.totalorder %s75, %s78
      %p87 = scmp.eq.s32.totalorder %s18, 1
      %p88 = por %p86, %p87
      %p89 = scmp.ne.s32.totalorder %s78, %s79
      %p90 = scmp.eq.s32.totalorder %s18, 0
      %p91 = por %p89, %p90
      %p92 = scmp.ne.s32.totalorder %s78, %s79
      %p93 = scmp.eq.s32.totalorder %s19, 1
      %p94 = por %p92, %p93
      %p96 = scmp.ne.s32.totalorder %s79, %s95
      %p97 = scmp.eq.s32.totalorder %s19, 0
      %p98 = por %p96, %p97
      %s100 = sadd.s32 %s99, 1
      %p103 = scmp.eq.s32.totalorder %s13, 1
      %p104 = scmp.ne.s32.totalorder %s99, %s101
      %p105 = scmp.eq.s32.totalorder %s13, 0
      %p106 = por %p104, %p105
      %p107 = scmp.ne.s32.totalorder %s99, %s101
      %p108 = scmp.eq.s32.totalorder %s18, 1
      %p109 = por %p107, %p108
      %p110 = scmp.ne.s32.totalorder %s101, %s102
      %p111 = scmp.eq.s32.totalorder %s18, 0
      %p112 = por %p110, %p111
      %p113 = scmp.ne.s32.totalorder %s101, %s102
      %p114 = scmp.eq.s32.totalorder %s19, 1
      %p115 = por %p113, %p114
      %p117 = scmp.ne.s32.totalorder %s102, %s116
      %p118 = scmp.eq.s32.totalorder %s19, 0
      %p119 = por %p117, %p118
      %s120 = ssub.s32 %s13, %s20
      %p121 = scmp.eq.s32.totalorder %s120, 0
      %s123 = sadd.s32 %s122, 1
      %s124 = scalar_select %p121, %s122, %s123
      %p127 = pneg %p121
      %p128 = scmp.eq.s32.totalorder %s13, 1
      %p129 = por %p127, %p128
      %p130 = scmp.ne.s32.totalorder %s122, %s125
      %p131 = scmp.eq.s32.totalorder %s13, 0
      %p132 = por %p130, %p131
      %p133 = scmp.ne.s32.totalorder %s122, %s125
      %p134 = scmp.eq.s32.totalorder %s18, 1
      %p135 = por %p133, %p134
      %p136 = scmp.ne.s32.totalorder %s125, %s126
      %p137 = scmp.eq.s32.totalorder %s18, 0
      %p138 = por %p136, %p137
      %p139 = scmp.ne.s32.totalorder %s125, %s126
      %p140 = scmp.eq.s32.totalorder %s19, 1
      %p141 = por %p139, %p140
      %p143 = scmp.ne.s32.totalorder %s126, %s142
      %p144 = scmp.eq.s32.totalorder %s19, 0
      %p145 = por %p143, %p144
      %p146 = scmp.le.s32.totalorder 1, %s13
      %p147 = scmp.lt.s32.totalorder %s13, 3
      %p148 = pnand %p146, %p147
      %p149 = pneg %p148
      // Predicated region
      $region9: #{tpu_custom_call.1} parent=5 // pred_check
        _
      $region10: #{tpu_custom_call.1} parent=5 // pred_check_branch
        %151 = sbr.rel (%p148) target = $region12
      $region11: #{tpu_custom_call.1} parent=5 // pred_region
        %s152 = ssub.s32 %s13, 1
        // Predicated region
        $region13: #{tpu_custom_call.1} parent=11 // pred_check
          %p153 = pneg %p112
        $region14: #{tpu_custom_call.1} parent=11 // pred_check_branch
          %155 = sbr.rel (%p153) target = $region16
        $region15: #{tpu_custom_call.1} parent=11 // pred_region
          _
        $region16: #{tpu_custom_call.1} parent=11 // pred_fallthru
          _
      $region12: #{tpu_custom_call.1} parent=5 // pred_fallthru
        _
      %p156 = scmp.lt.s32.totalorder %s13, 2
      // Predicated region
      $region17: #{tpu_custom_call.1} parent=5 // pred_check
        %p157 = pneg %p156
      $region18: #{tpu_custom_call.1} parent=5 // pred_check_branch
        %159 = sbr.rel (%p157) target = $region20
      $region19: #{tpu_custom_call.1} parent=5 // pred_region
        // Predicated region
        $region21: #{tpu_custom_call.1} parent=19 // pred_check
          %p160 = pneg %p33
        $region22: #{tpu_custom_call.1} parent=19 // pred_check_branch
          %162 = sbr.rel (%p160) target = $region24
        $region23: #{tpu_custom_call.1} parent=19 // pred_region
          %s163 = sand.u32 %s23, 1
          %s164 = sand.u32 %s23, 1
          %s165 = smul.addr %s164, 128
          %s166 = scalar_lea.vmem [#allocation2], %s165
          %s167 = smul.u32 4, %s13
          %s168 = smul.addr %s167, 8
          %s169 = scalar_lea.vmem %s0, %s168
          // Predicated region
          $region25: #{tpu_custom_call.1} parent=23 // pred_check
            _
          $region26: #{tpu_custom_call.1} parent=23 // pred_check_branch
            %171 = sbr.rel (0) target = $region28
          $region27: #{tpu_custom_call.1} parent=23 // pred_region
            // Predicated region
            $region29: #{tpu_custom_call.1} parent=27 // pred_check
              _
            $region30: #{tpu_custom_call.1} parent=27 // pred_check_branch
              %173 = sbr.rel (0) target = $region32
            $region31: #{tpu_custom_call.1} parent=27 // pred_region
              loop: start=0, step=1, limit=1
              $region33: #{tpu_custom_call.1} parent=31 // loop_pre_header
                _
              $region34: #{tpu_custom_call.1} parent=31 // loop_header
                %s175 = sphi 0, %s179
                %p176 = scmp.ge.s32.totalorder %s175, 1
                %s180 = sphi %s169, %s169
                %s181 = sphi %s166, %s166
              $region35: #{tpu_custom_call.1} parent=31 // loop_header_branch
                %178 = sbr.rel (%p176) target = $region39
              $region36: #{tpu_custom_call.1} parent=31 // loop_body
                %v182 = vld [vmem:[%s180] sm:$0xff]
                %183 = vst [vmem:[%s181] sm:$0xff] %v182
                %v184 = vld [vmem:[%s180 + $0x8] sm:$0xff]
                %185 = vst [vmem:[%s181 + $0x8] sm:$0xff] %v184
                %v186 = vld [vmem:[%s180 + $0x10] sm:$0xff]
                %187 = vst [vmem:[%s181 + $0x10] sm:$0xff] %v186
                %v188 = vld [vmem:[%s180 + $0x18] sm:$0xff]
                %189 = vst [vmem:[%s181 + $0x18] sm:$0xff] %v188
                %v190 = vld [vmem:[%s180 + $0x40] sm:$0xff]
                %191 = vst [vmem:[%s181 + $0x20] sm:$0xff] %v190
                %v192 = vld [vmem:[%s180 + $0x48] sm:$0xff]
                %193 = vst [vmem:[%s181 + $0x28] sm:$0xff] %v192
                %v194 = vld [vmem:[%s180 + $0x50] sm:$0xff]
                %195 = vst [vmem:[%s181 + $0x30] sm:$0xff] %v194
                %v196 = vld [vmem:[%s180 + $0x58] sm:$0xff]
                %197 = vst [vmem:[%s181 + $0x38] sm:$0xff] %v196
                %v198 = vld [vmem:[%s180 + $0x80] sm:$0xff]
                %199 = vst [vmem:[%s181 + $0x40] sm:$0xff] %v198
                %v200 = vld [vmem:[%s180 + $0x88] sm:$0xff]
                %201 = vst [vmem:[%s181 + $0x48] sm:$0xff] %v200
                %v202 = vld [vmem:[%s180 + $0x90] sm:$0xff]
                %203 = vst [vmem:[%s181 + $0x50] sm:$0xff] %v202
                %v204 = vld [vmem:[%s180 + $0x98] sm:$0xff]
                %205 = vst [vmem:[%s181 + $0x58] sm:$0xff] %v204
                %v206 = vld [vmem:[%s180 + $0xc0] sm:$0xff]
                %207 = vst [vmem:[%s181 + $0x60] sm:$0xff] %v206
                %v208 = vld [vmem:[%s180 + $0xc8] sm:$0xff]
                %209 = vst [vmem:[%s181 + $0x68] sm:$0xff] %v208
                %v210 = vld [vmem:[%s180 + $0xd0] sm:$0xff]
                %211 = vst [vmem:[%s181 + $0x70] sm:$0xff] %v210
                %v212 = vld [vmem:[%s180 + $0xd8] sm:$0xff]
                %213 = vst [vmem:[%s181 + $0x78] sm:$0xff] %v212
              $region37: #{tpu_custom_call.1} parent=31 // loop_footer
                %s179 = sadd.s32 1, %s175
              $region38: #{tpu_custom_call.1} parent=31 // loop_footer_branch
                %174 = sbr.rel target = $region34
              $region39: #{tpu_custom_call.1} parent=31 // loop_exit
                _
            $region32: #{tpu_custom_call.1} parent=27 // pred_fallthru
              _
            // Predicated region
            $region40: #{tpu_custom_call.1} parent=27 // pred_check
              _
            $region41: #{tpu_custom_call.1} parent=27 // pred_check_branch
              %215 = sbr.rel target = $region43
            $region42: #{tpu_custom_call.1} parent=27 // pred_region
              _
            $region43: #{tpu_custom_call.1} parent=27 // pred_fallthru
              _
          $region28: #{tpu_custom_call.1} parent=23 // pred_fallthru
            _
          %216 = vnop
        $region24: #{tpu_custom_call.1} parent=19 // pred_fallthru
          _
        // Predicated region
        $region44: #{tpu_custom_call.1} parent=19 // pred_check
          %p217 = pneg %p59
        $region45: #{tpu_custom_call.1} parent=19 // pred_check_branch
          %219 = sbr.rel (%p217) target = $region47
        $region46: #{tpu_custom_call.1} parent=19 // pred_region
          %s220 = smul.u32 4, %s13
          %p221 = scmp.lt.s32.totalorder %s220, 7
          %s222 = scalar_select %p221, %s220, 7
          %s223 = smul.addr %s222, 4
          %s224 = scalar_lea.vmem %s1, %s223
          %s225 = smul.u32 4, %s13
        $region47: #{tpu_custom_call.1} parent=19 // pred_fallthru
          _
        // Predicated region
        $region48: #{tpu_custom_call.1} parent=19 // pred_check
          %p226 = pneg %p85
        $region49: #{tpu_custom_call.1} parent=19 // pred_check_branch
          %228 = sbr.rel (%p226) target = $region51
        $region50: #{tpu_custom_call.1} parent=19 // pred_region
          %s229 = sand.u32 %s75, 1
          %s230 = sand.u32 %s75, 1
          %s231 = smul.addr %s230, 128
          %s232 = scalar_lea.vmem [#allocation3], %s231
          %s233 = smul.u32 4, %s13
          %s234 = smul.addr %s233, 8
          %s235 = scalar_lea.vmem %s2, %s234
          // Predicated region
          $region52: #{tpu_custom_call.1} parent=50 // pred_check
            _
          $region53: #{tpu_custom_call.1} parent=50 // pred_check_branch
            %237 = sbr.rel (0) target = $region55
          $region54: #{tpu_custom_call.1} parent=50 // pred_region
            // Predicated region
            $region56: #{tpu_custom_call.1} parent=54 // pred_check
              _
            $region57: #{tpu_custom_call.1} parent=54 // pred_check_branch
              %239 = sbr.rel (0) target = $region59
            $region58: #{tpu_custom_call.1} parent=54 // pred_region
              loop: start=0, step=1, limit=1
              $region60: #{tpu_custom_call.1} parent=58 // loop_pre_header
                _
              $region61: #{tpu_custom_call.1} parent=58 // loop_header
                %s241 = sphi 0, %s245
                %p242 = scmp.ge.s32.totalorder %s241, 1
                %s246 = sphi %s235, %s235
                %s247 = sphi %s232, %s232
              $region62: #{tpu_custom_call.1} parent=58 // loop_header_branch
                %244 = sbr.rel (%p242) target = $region66
              $region63: #{tpu_custom_call.1} parent=58 // loop_body
                %v248 = vld [vmem:[%s246] sm:$0xff]
                %249 = vst [vmem:[%s247] sm:$0xff] %v248
                %v250 = vld [vmem:[%s246 + $0x8] sm:$0xff]
                %251 = vst [vmem:[%s247 + $0x8] sm:$0xff] %v250
                %v252 = vld [vmem:[%s246 + $0x10] sm:$0xff]
                %253 = vst [vmem:[%s247 + $0x10] sm:$0xff] %v252
                %v254 = vld [vmem:[%s246 + $0x18] sm:$0xff]
                %255 = vst [vmem:[%s247 + $0x18] sm:$0xff] %v254
                %v256 = vld [vmem:[%s246 + $0x40] sm:$0xff]
                %257 = vst [vmem:[%s247 + $0x20] sm:$0xff] %v256
                %v258 = vld [vmem:[%s246 + $0x48] sm:$0xff]
                %259 = vst [vmem:[%s247 + $0x28] sm:$0xff] %v258
                %v260 = vld [vmem:[%s246 + $0x50] sm:$0xff]
                %261 = vst [vmem:[%s247 + $0x30] sm:$0xff] %v260
                %v262 = vld [vmem:[%s246 + $0x58] sm:$0xff]
                %263 = vst [vmem:[%s247 + $0x38] sm:$0xff] %v262
                %v264 = vld [vmem:[%s246 + $0x80] sm:$0xff]
                %265 = vst [vmem:[%s247 + $0x40] sm:$0xff] %v264
                %v266 = vld [vmem:[%s246 + $0x88] sm:$0xff]
                %267 = vst [vmem:[%s247 + $0x48] sm:$0xff] %v266
                %v268 = vld [vmem:[%s246 + $0x90] sm:$0xff]
                %269 = vst [vmem:[%s247 + $0x50] sm:$0xff] %v268
                %v270 = vld [vmem:[%s246 + $0x98] sm:$0xff]
                %271 = vst [vmem:[%s247 + $0x58] sm:$0xff] %v270
                %v272 = vld [vmem:[%s246 + $0xc0] sm:$0xff]
                %273 = vst [vmem:[%s247 + $0x60] sm:$0xff] %v272
                %v274 = vld [vmem:[%s246 + $0xc8] sm:$0xff]
                %275 = vst [vmem:[%s247 + $0x68] sm:$0xff] %v274
                %v276 = vld [vmem:[%s246 + $0xd0] sm:$0xff]
                %277 = vst [vmem:[%s247 + $0x70] sm:$0xff] %v276
                %v278 = vld [vmem:[%s246 + $0xd8] sm:$0xff]
                %279 = vst [vmem:[%s247 + $0x78] sm:$0xff] %v278
              $region64: #{tpu_custom_call.1} parent=58 // loop_footer
                %s245 = sadd.s32 1, %s241
              $region65: #{tpu_custom_call.1} parent=58 // loop_footer_branch
                %240 = sbr.rel target = $region61
              $region66: #{tpu_custom_call.1} parent=58 // loop_exit
                _
            $region59: #{tpu_custom_call.1} parent=54 // pred_fallthru
              _
            // Predicated region
            $region67: #{tpu_custom_call.1} parent=54 // pred_check
              _
            $region68: #{tpu_custom_call.1} parent=54 // pred_check_branch
              %281 = sbr.rel target = $region70
            $region69: #{tpu_custom_call.1} parent=54 // pred_region
              _
            $region70: #{tpu_custom_call.1} parent=54 // pred_fallthru
              _
          $region55: #{tpu_custom_call.1} parent=50 // pred_fallthru
            _
          %282 = vnop
        $region51: #{tpu_custom_call.1} parent=19 // pred_fallthru
          _
      $region20: #{tpu_custom_call.1} parent=5 // pred_fallthru
        _
      %p283 = scmp.le.s32.totalorder 1, %s13
      %p284 = scmp.lt.s32.totalorder %s13, 3
      %p285 = pnand %p283, %p284
      %p286 = pneg %p285
      // Predicated region
      $region71: #{tpu_custom_call.1} parent=5 // pred_check
        _
      $region72: #{tpu_custom_call.1} parent=5 // pred_check_branch
        %288 = sbr.rel (%p285) target = $region74
      $region73: #{tpu_custom_call.1} parent=5 // pred_region
        %s289 = ssub.s32 %s13, 1
        %s290 = sand.u32 %s26, 1
        %s291 = sand.u32 %s26, 1
        %s292 = smul.addr %s291, 128
        %s293 = scalar_lea.vmem [#allocation2], %s292
        // Predicated region
        $region75: #{tpu_custom_call.1} parent=73 // pred_check
          %p294 = pneg %p39
        $region76: #{tpu_custom_call.1} parent=73 // pred_check_branch
          %296 = sbr.rel (%p294) target = $region78
        $region77: #{tpu_custom_call.1} parent=73 // pred_region
          _
        $region78: #{tpu_custom_call.1} parent=73 // pred_fallthru
          _
        %s297 = sand.u32 %s78, 1
        %s298 = sand.u32 %s78, 1
        %s299 = smul.addr %s298, 128
        %s300 = scalar_lea.vmem [#allocation3], %s299
        // Predicated region
        $region79: #{tpu_custom_call.1} parent=73 // pred_check
          %p301 = pneg %p91
        $region80: #{tpu_custom_call.1} parent=73 // pred_check_branch
          %303 = sbr.rel (%p301) target = $region82
        $region81: #{tpu_custom_call.1} parent=73 // pred_region
          _
        $region82: #{tpu_custom_call.1} parent=73 // pred_fallthru
          _
        %s304 = sand.u32 %s26, 1
        %s305 = sand.u32 %s26, 1
        %s306 = smul.addr %s305, 128
        %s307 = scalar_lea.vmem [#allocation2], %s306
        %p308 = pneg %p39
        %p309 = pneg %p36
        %s310 = smul.u32 4, %s18
        %p311 = scmp.lt.s32.totalorder %s310, 7
        %s312 = scalar_select %p311, %s310, 7
        %s313 = smul.addr %s312, 4
        %s314 = scalar_lea.vmem %s1, %s313
        %p315 = pneg %p65
        %p316 = pneg %p62
        %s317 = sand.u32 %s78, 1
        %s318 = sand.u32 %s78, 1
        %s319 = smul.addr %s318, 128
        %s320 = scalar_lea.vmem [#allocation3], %s319
        %p321 = pneg %p91
        %p322 = pneg %p88
        %p323 = pneg %p112
        %p324 = pneg %p109
        %p325 = pneg %p138
        %p326 = pneg %p135
        %s327 = sand.u32 %s125, 1
        %s328 = scalar_lea.sflag [#allocation5], %s327
        %s329 = sand.u32 %s125, 1
        %s330 = smul.addr %s329, 128
        %s331 = scalar_lea.vmem [#allocation4], %s330
        %s332 = smul.u32 4, %s18
        %s333 = smul.u32 4, %s18
        %p334 = scmp.lt.s32.totalorder %s333, 7
        %s335 = scalar_select %p334, %s333, 7
        %s336 = smul.addr %s335, 4
        %s337 = scalar_lea.vmem %s1, %s336
        %s338 = smul.u32 4, %s18
        %s339 = smul.u32 4, %s18
        %s340 = smul.u32 4, %s18
        %v341 = vld [vmem:[%s293] sm:$0xff]
        %v342 = vld [vmem:[%s293 + $0x8] sm:$0xff]
        %v343 = vld [vmem:[%s293 + $0x10] sm:$0xff]
        %v344 = vld [vmem:[%s293 + $0x18] sm:$0xff]
        %v345 = vld [vmem:[%s293 + $0x20] sm:$0xff]
        %v346 = vld [vmem:[%s293 + $0x28] sm:$0xff]
        %v347 = vld [vmem:[%s293 + $0x30] sm:$0xff]
        %v348 = vld [vmem:[%s293 + $0x38] sm:$0xff]
        %v349 = vld [vmem:[%s293 + $0x40] sm:$0xff]
        %v350 = vld [vmem:[%s293 + $0x48] sm:$0xff]
        %v351 = vld [vmem:[%s293 + $0x50] sm:$0xff]
        %v352 = vld [vmem:[%s293 + $0x58] sm:$0xff]
        %v353 = vld [vmem:[%s293 + $0x60] sm:$0xff]
        %v354 = vld [vmem:[%s293 + $0x68] sm:$0xff]
        %v355 = vld [vmem:[%s293 + $0x70] sm:$0xff]
        %v356 = vld [vmem:[%s293 + $0x78] sm:$0xff]
        %v357 = vmul.f32 %v341, %v341
        %v358 = vmul.f32 %v342, %v342
        %v359 = vmul.f32 %v343, %v343
        %v360 = vmul.f32 %v344, %v344
        %v361 = vmul.f32 %v341, %v345
        %v362 = vmul.f32 %v342, %v346
        %v363 = vmul.f32 %v343, %v347
        %v364 = vmul.f32 %v344, %v348
        %v365 = vmul.f32 %v341, %v349
        %v366 = vmul.f32 %v342, %v350
        %v367 = vmul.f32 %v343, %v351
        %v368 = vmul.f32 %v344, %v352
        %v369 = vmul.f32 %v341, %v353
        %v370 = vmul.f32 %v342, %v354
        %v371 = vmul.f32 %v343, %v355
        %v372 = vmul.f32 %v344, %v356
        %v373 = vmul.f32 %v345, %v345
        %v374 = vmul.f32 %v346, %v346
        %v375 = vmul.f32 %v347, %v347
        %v376 = vmul.f32 %v348, %v348
        %v377 = vmul.f32 %v345, %v349
        %v378 = vmul.f32 %v346, %v350
        %v379 = vmul.f32 %v347, %v351
        %v380 = vmul.f32 %v348, %v352
        %v381 = vmul.f32 %v345, %v353
        %v382 = vmul.f32 %v346, %v354
        %v383 = vmul.f32 %v347, %v355
        %v384 = vmul.f32 %v348, %v356
        %v385 = vmul.f32 %v349, %v349
        %v386 = vmul.f32 %v350, %v350
        %v387 = vmul.f32 %v351, %v351
        %v388 = vmul.f32 %v352, %v352
        %v389 = vmul.f32 %v349, %v353
        %v390 = vmul.f32 %v350, %v354
        %v391 = vmul.f32 %v351, %v355
        %v392 = vmul.f32 %v352, %v356
        %v393 = vmul.f32 %v353, %v353
        %v394 = vmul.f32 %v354, %v354
        %v395 = vmul.f32 %v355, %v355
        %v396 = vmul.f32 %v356, %v356
        %v397 = vmul.f32 %v357, %v341
        %v398 = vmul.f32 %v358, %v342
        %v399 = vmul.f32 %v359, %v343
        %v400 = vmul.f32 %v360, %v344
        %v401 = vmul.f32 %v357, %v345
        %v402 = vmul.f32 %v358, %v346
        %v403 = vmul.f32 %v359, %v347
        %v404 = vmul.f32 %v360, %v348
        %v405 = vmul.f32 %v357, %v349
        %v406 = vmul.f32 %v358, %v350
        %v407 = vmul.f32 %v359, %v351
        %v408 = vmul.f32 %v360, %v352
        %v409 = vmul.f32 %v357, %v353
        %v410 = vmul.f32 %v358, %v354
        %v411 = vmul.f32 %v359, %v355
        %v412 = vmul.f32 %v360, %v356
        %v413 = vmul.f32 %v361, %v345
        %v414 = vmul.f32 %v362, %v346
        %v415 = vmul.f32 %v363, %v347
        %v416 = vmul.f32 %v364, %v348
        %v417 = vmul.f32 %v361, %v349
        %v418 = vmul.f32 %v362, %v350
        %v419 = vmul.f32 %v363, %v351
        %v420 = vmul.f32 %v364, %v352
        %v421 = vmul.f32 %v361, %v353
        %v422 = vmul.f32 %v362, %v354
        %v423 = vmul.f32 %v363, %v355
        %v424 = vmul.f32 %v364, %v356
        %v425 = vmul.f32 %v365, %v349
        %v426 = vmul.f32 %v366, %v350
        %v427 = vmul.f32 %v367, %v351
        %v428 = vmul.f32 %v368, %v352
        %v429 = vmul.f32 %v365, %v353
        %v430 = vmul.f32 %v366, %v354
        %v431 = vmul.f32 %v367, %v355
        %v432 = vmul.f32 %v368, %v356
        %v433 = vmul.f32 %v369, %v353
        %v434 = vmul.f32 %v370, %v354
        %v435 = vmul.f32 %v371, %v355
        %v436 = vmul.f32 %v372, %v356
        %v437 = vmul.f32 %v373, %v345
        %v438 = vmul.f32 %v374, %v346
        %v439 = vmul.f32 %v375, %v347
        %v440 = vmul.f32 %v376, %v348
        %v441 = vmul.f32 %v373, %v349
        %v442 = vmul.f32 %v374, %v350
        %v443 = vmul.f32 %v375, %v351
        %v444 = vmul.f32 %v376, %v352
        %v445 = vmul.f32 %v373, %v353
        %v446 = vmul.f32 %v374, %v354
        %v447 = vmul.f32 %v375, %v355
        %v448 = vmul.f32 %v376, %v356
        %v449 = vmul.f32 %v377, %v349
        %v450 = vmul.f32 %v378, %v350
        %v451 = vmul.f32 %v379, %v351
        %v452 = vmul.f32 %v380, %v352
        %v453 = vmul.f32 %v377, %v353
        %v454 = vmul.f32 %v378, %v354
        %v455 = vmul.f32 %v379, %v355
        %v456 = vmul.f32 %v380, %v356
        %v457 = vmul.f32 %v381, %v353
        %v458 = vmul.f32 %v382, %v354
        %v459 = vmul.f32 %v383, %v355
        %v460 = vmul.f32 %v384, %v356
        %v461 = vmul.f32 %v385, %v349
        %v462 = vmul.f32 %v386, %v350
        %v463 = vmul.f32 %v387, %v351
        %v464 = vmul.f32 %v388, %v352
        %v465 = vmul.f32 %v385, %v353
        %v466 = vmul.f32 %v386, %v354
        %v467 = vmul.f32 %v387, %v355
        %v468 = vmul.f32 %v388, %v356
        %v469 = vmul.f32 %v389, %v353
        %v470 = vmul.f32 %v390, %v354
        %v471 = vmul.f32 %v391, %v355
        %v472 = vmul.f32 %v392, %v356
        %v473 = vmul.f32 %v393, %v353
        %v474 = vmul.f32 %v394, %v354
        %v475 = vmul.f32 %v395, %v355
        %v476 = vmul.f32 %v396, %v356
        %v477 = vld [vmem:[%s3] sm:$0xff]
        %v478 = vld [vmem:[%s3 + $0x8] sm:$0xff]
        %v479 = vld [vmem:[%s3 + $0x10] sm:$0xff]
        %v480 = vld [vmem:[%s3 + $0x18] sm:$0xff]
        %v481 = vld [vmem:[%s3 + $0x20] sm:$0xff]
        %v482 = vld [vmem:[%s3 + $0x28] sm:$0xff]
        %v483 = vld [vmem:[%s3 + $0x30] sm:$0xff]
        %v484 = vld [vmem:[%s3 + $0x38] sm:$0xff]
        %v485 = vld [vmem:[%s3 + $0x40] sm:$0xff]
        %v486 = vld [vmem:[%s3 + $0x48] sm:$0xff]
        %v487 = vld [vmem:[%s3 + $0x50] sm:$0xff]
        %v488 = vld [vmem:[%s3 + $0x58] sm:$0xff]
        %v489 = vld [vmem:[%s3 + $0x60] sm:$0xff]
        %v490 = vld [vmem:[%s3 + $0x68] sm:$0xff]
        %v491 = vld [vmem:[%s3 + $0x70] sm:$0xff]
        %v492 = vld [vmem:[%s3 + $0x78] sm:$0xff]
        %v493 = vld [vmem:[%s3 + $0x80] sm:$0xff]
        %v494 = vld [vmem:[%s3 + $0x88] sm:$0xff]
        %v495 = vld [vmem:[%s3 + $0x90] sm:$0xff]
        %v496 = vld [vmem:[%s3 + $0x98] sm:$0xff]
        %v497 = vld [vmem:[%s3 + $0xa0] sm:$0xff]
        %v498 = vld [vmem:[%s3 + $0xa8] sm:$0xff]
        %v499 = vld [vmem:[%s3 + $0xb0] sm:$0xff]
        %v500 = vld [vmem:[%s3 + $0xb8] sm:$0xff]
        %v501 = vld [vmem:[%s3 + $0xc0] sm:$0xff]
        %v502 = vld [vmem:[%s3 + $0xc8] sm:$0xff]
        %v503 = vld [vmem:[%s3 + $0xd0] sm:$0xff]
        %v504 = vld [vmem:[%s3 + $0xd8] sm:$0xff]
        %v505 = vld [vmem:[%s3 + $0xe0] sm:$0xff]
        %v506 = vld [vmem:[%s3 + $0xe8] sm:$0xff]
        %v507 = vld [vmem:[%s3 + $0xf0] sm:$0xff]
        %v508 = vld [vmem:[%s3 + $0xf8] sm:$0xff]
        %v509 = vld [vmem:[%s3 + $0x100] sm:$0xff]
        %v510 = vld [vmem:[%s3 + $0x108] sm:$0xff]
        %v511 = vld [vmem:[%s3 + $0x110] sm:$0xff]
        %v512 = vld [vmem:[%s3 + $0x118] sm:$0xff]
        %v513 = vld [vmem:[%s3 + $0x120] sm:$0xff]
        %v514 = vld [vmem:[%s3 + $0x128] sm:$0xff]
        %v515 = vld [vmem:[%s3 + $0x130] sm:$0xff]
        %v516 = vld [vmem:[%s3 + $0x138] sm:$0xff]
        %v517 = vld [vmem:[%s3 + $0x140] sm:$0xff]
        %v518 = vld [vmem:[%s3 + $0x148] sm:$0xff]
        %v519 = vld [vmem:[%s3 + $0x150] sm:$0xff]
        %v520 = vld [vmem:[%s3 + $0x158] sm:$0xff]
        %v521 = vld [vmem:[%s3 + $0x160] sm:$0xff]
        %v522 = vld [vmem:[%s3 + $0x168] sm:$0xff]
        %v523 = vld [vmem:[%s3 + $0x170] sm:$0xff]
        %v524 = vld [vmem:[%s3 + $0x178] sm:$0xff]
        %vm525 = vcmask 130048
        %v527 = vsel %vm525, %v479, 0
        %v530 = vsel %vm525, %v482, 0
        %v533 = vsel %vm525, %v485, 0
        %v536 = vsel %vm525, %v488, 0
        %v539 = vsel %vm525, %v491, 0
        %v542 = vsel %vm525, %v494, 0
        %v545 = vsel %vm525, %v497, 0
        %v548 = vsel %vm525, %v500, 0
        %v551 = vsel %vm525, %v503, 0
        %v554 = vsel %vm525, %v506, 0
        %v557 = vsel %vm525, %v509, 0
        %v560 = vsel %vm525, %v512, 0
        %v563 = vsel %vm525, %v515, 0
        %v566 = vsel %vm525, %v518, 0
        %v569 = vsel %vm525, %v521, 0
        %v572 = vsel %vm525, %v524, 0
        %574 = vmatpush.msra.mxu0 %v401
        %575 = vmatpush.msra.mxu0 %v397
        %576 = vmatpush.msra.mxu0 %v393
        %577 = vmatpush.msra.mxu0 %v389
        %578 = vmatpush.msra.mxu0 %v385
        %579 = vmatpush.msra.mxu0 %v381
        %580 = vmatpush.msra.mxu0 %v377
        %581 = vmatpush.msra.mxu0 %v373
        %582 = vmatpush.msra.mxu0 %v369
        %583 = vmatpush.msra.mxu0 %v365
        %584 = vmatpush.msra.mxu0 %v361
        %585 = vmatpush.msra.mxu0 %v357
        %586 = vmatpush.msra.mxu0 %v353
        %587 = vmatpush.msra.mxu0 %v349
        %588 = vmatpush.msra.mxu0 %v345
        %589 = vmatpush.msra.mxu0 %v341
        %590 = vmatmul.f32.gmra.mxu0 %v477
        %v591 = vpop.f32.mrf.mxu0
        %v592 = vadd.f32 0.0, %v591
        %593 = vmatmul.f32.gmra.mxu0 %v480
        %v594 = vpop.f32.mrf.mxu0
        %v595 = vadd.f32 0.0, %v594
        %596 = vmatmul.f32.gmra.mxu0 %v483
        %v597 = vpop.f32.mrf.mxu0
        %v598 = vadd.f32 0.0, %v597
        %599 = vmatmul.f32.gmra.mxu0 %v486
        %v600 = vpop.f32.mrf.mxu0
        %v601 = vadd.f32 0.0, %v600
        %602 = vmatmul.f32.gmra.mxu0 %v489
        %v603 = vpop.f32.mrf.mxu0
        %v604 = vadd.f32 0.0, %v603
        %605 = vmatmul.f32.gmra.mxu0 %v492
        %v606 = vpop.f32.mrf.mxu0
        %v607 = vadd.f32 0.0, %v606
        %608 = vmatmul.f32.gmra.mxu0 %v495
        %v609 = vpop.f32.mrf.mxu0
        %v610 = vadd.f32 0.0, %v609
        %611 = vmatmul.f32.gmra.mxu0 %v498
        %v612 = vpop.f32.mrf.mxu0
        %v613 = vadd.f32 0.0, %v612
        %614 = vmatmul.f32.gmra.mxu0 %v501
        %v615 = vpop.f32.mrf.mxu0
        %v616 = vadd.f32 0.0, %v615
        %617 = vmatmul.f32.gmra.mxu0 %v504
        %v618 = vpop.f32.mrf.mxu0
        %v619 = vadd.f32 0.0, %v618
        %620 = vmatmul.f32.gmra.mxu0 %v507
        %v621 = vpop.f32.mrf.mxu0
        %v622 = vadd.f32 0.0, %v621
        %623 = vmatmul.f32.gmra.mxu0 %v510
        %v624 = vpop.f32.mrf.mxu0
        %v625 = vadd.f32 0.0, %v624
        %626 = vmatmul.f32.gmra.mxu0 %v513
        %v627 = vpop.f32.mrf.mxu0
        %v628 = vadd.f32 0.0, %v627
        %629 = vmatmul.f32.gmra.mxu0 %v516
        %v630 = vpop.f32.mrf.mxu0
        %v631 = vadd.f32 0.0, %v630
        %632 = vmatmul.f32.gmra.mxu0 %v519
        %v633 = vpop.f32.mrf.mxu0
        %v634 = vadd.f32 0.0, %v633
        %635 = vmatmul.f32.gmra.mxu0 %v522
        %v636 = vpop.f32.mrf.mxu0
        %v637 = vadd.f32 0.0, %v636
        %638 = vdwg.mxu0
        %639 = vmatpush.msra.mxu0 %v465
        %640 = vmatpush.msra.mxu0 %v461
        %641 = vmatpush.msra.mxu0 %v457
        %642 = vmatpush.msra.mxu0 %v453
        %643 = vmatpush.msra.mxu0 %v449
        %644 = vmatpush.msra.mxu0 %v445
        %645 = vmatpush.msra.mxu0 %v441
        %646 = vmatpush.msra.mxu0 %v437
        %647 = vmatpush.msra.mxu0 %v433
        %648 = vmatpush.msra.mxu0 %v429
        %649 = vmatpush.msra.mxu0 %v425
        %650 = vmatpush.msra.mxu0 %v421
        %651 = vmatpush.msra.mxu0 %v417
        %652 = vmatpush.msra.mxu0 %v413
        %653 = vmatpush.msra.mxu0 %v409
        %654 = vmatpush.msra.mxu0 %v405
        %655 = vmatmul.f32.gmra.mxu0 %v478
        %v656 = vpop.f32.mrf.mxu0
        %v657 = vadd.f32 %v592, %v656
        %658 = vmatmul.f32.gmra.mxu0 %v481
        %v659 = vpop.f32.mrf.mxu0
        %v660 = vadd.f32 %v595, %v659
        %661 = vmatmul.f32.gmra.mxu0 %v484
        %v662 = vpop.f32.mrf.mxu0
        %v663 = vadd.f32 %v598, %v662
        %664 = vmatmul.f32.gmra.mxu0 %v487
        %v665 = vpop.f32.mrf.mxu0
        %v666 = vadd.f32 %v601, %v665
        %667 = vmatmul.f32.gmra.mxu0 %v490
        %v668 = vpop.f32.mrf.mxu0
        %v669 = vadd.f32 %v604, %v668
        %670 = vmatmul.f32.gmra.mxu0 %v493
        %v671 = vpop.f32.mrf.mxu0
        %v672 = vadd.f32 %v607, %v671
        %673 = vmatmul.f32.gmra.mxu0 %v496
        %v674 = vpop.f32.mrf.mxu0
        %v675 = vadd.f32 %v610, %v674
        %676 = vmatmul.f32.gmra.mxu0 %v499
        %v677 = vpop.f32.mrf.mxu0
        %v678 = vadd.f32 %v613, %v677
        %679 = vmatmul.f32.gmra.mxu0 %v502
        %v680 = vpop.f32.mrf.mxu0
        %v681 = vadd.f32 %v616, %v680
        %682 = vmatmul.f32.gmra.mxu0 %v505
        %v683 = vpop.f32.mrf.mxu0
        %v684 = vadd.f32 %v619, %v683
        %685 = vmatmul.f32.gmra.mxu0 %v508
        %v686 = vpop.f32.mrf.mxu0
        %v687 = vadd.f32 %v622, %v686
        %688 = vmatmul.f32.gmra.mxu0 %v511
        %v689 = vpop.f32.mrf.mxu0
        %v690 = vadd.f32 %v625, %v689
        %691 = vmatmul.f32.gmra.mxu0 %v514
        %v692 = vpop.f32.mrf.mxu0
        %v693 = vadd.f32 %v628, %v692
        %694 = vmatmul.f32.gmra.mxu0 %v517
        %v695 = vpop.f32.mrf.mxu0
        %v696 = vadd.f32 %v631, %v695
        %697 = vmatmul.f32.gmra.mxu0 %v520
        %v698 = vpop.f32.mrf.mxu0
        %v699 = vadd.f32 %v634, %v698
        %700 = vmatmul.f32.gmra.mxu0 %v523
        %v701 = vpop.f32.mrf.mxu0
        %v702 = vadd.f32 %v637, %v701
        %703 = vdwg.mxu0
        %704 = vmatpush.msra.mxu0 0.0
        %705 = vmatpush.msra.mxu0 0.0
        %706 = vmatpush.msra.mxu0 0.0
        %707 = vmatpush.msra.mxu0 0.0
        %708 = vmatpush.msra.mxu0 0.0
        %709 = vmatpush.msra.mxu0 0.0
        %710 = vmatpush.msra.mxu0 0.0
        %711 = vmatpush.msra.mxu0 0.0
        %712 = vmatpush.msra.mxu0 0.0
        %713 = vmatpush.msra.mxu0 0.0
        %714 = vmatpush.msra.mxu0 0.0
        %715 = vmatpush.msra.mxu0 0.0
        %716 = vmatpush.msra.mxu0 0.0
        %717 = vmatpush.msra.mxu0 0.0
        %718 = vmatpush.msra.mxu0 %v473
        %719 = vmatpush.msra.mxu0 %v469
        %720 = vmatmul.f32.gmra.mxu0 %v527
        %v721 = vpop.f32.mrf.mxu0
        %v722 = vadd.f32 %v657, %v721
        %723 = vmatmul.f32.gmra.mxu0 %v530
        %v724 = vpop.f32.mrf.mxu0
        %v725 = vadd.f32 %v660, %v724
        %726 = vmatmul.f32.gmra.mxu0 %v533
        %v727 = vpop.f32.mrf.mxu0
        %v728 = vadd.f32 %v663, %v727
        %729 = vmatmul.f32.gmra.mxu0 %v536
        %v730 = vpop.f32.mrf.mxu0
        %v731 = vadd.f32 %v666, %v730
        %732 = vmatmul.f32.gmra.mxu0 %v539
        %v733 = vpop.f32.mrf.mxu0
        %v734 = vadd.f32 %v669, %v733
        %735 = vmatmul.f32.gmra.mxu0 %v542
        %v736 = vpop.f32.mrf.mxu0
        %v737 = vadd.f32 %v672, %v736
        %738 = vmatmul.f32.gmra.mxu0 %v545
        %v739 = vpop.f32.mrf.mxu0
        %v740 = vadd.f32 %v675, %v739
        %741 = vmatmul.f32.gmra.mxu0 %v548
        %v742 = vpop.f32.mrf.mxu0
        %v743 = vadd.f32 %v678, %v742
        %744 = vmatmul.f32.gmra.mxu0 %v551
        %v745 = vpop.f32.mrf.mxu0
        %v746 = vadd.f32 %v681, %v745
        %747 = vmatmul.f32.gmra.mxu0 %v554
        %v748 = vpop.f32.mrf.mxu0
        %v749 = vadd.f32 %v684, %v748
        %750 = vmatmul.f32.gmra.mxu0 %v557
        %v751 = vpop.f32.mrf.mxu0
        %v752 = vadd.f32 %v687, %v751
        %753 = vmatmul.f32.gmra.mxu0 %v560
        %v754 = vpop.f32.mrf.mxu0
        %v755 = vadd.f32 %v690, %v754
        %756 = vmatmul.f32.gmra.mxu0 %v563
        %v757 = vpop.f32.mrf.mxu0
        %v758 = vadd.f32 %v693, %v757
        %759 = vmatmul.f32.gmra.mxu0 %v566
        %v760 = vpop.f32.mrf.mxu0
        %v761 = vadd.f32 %v696, %v760
        %762 = vmatmul.f32.gmra.mxu0 %v569
        %v763 = vpop.f32.mrf.mxu0
        %v764 = vadd.f32 %v699, %v763
        %765 = vmatmul.f32.gmra.mxu0 %v572
        %v766 = vpop.f32.mrf.mxu0
        %v767 = vadd.f32 %v702, %v766
        %768 = vdwg.mxu0
        %769 = vmatpush.msra.mxu0 %v402
        %770 = vmatpush.msra.mxu0 %v398
        %771 = vmatpush.msra.mxu0 %v394
        %772 = vmatpush.msra.mxu0 %v390
        %773 = vmatpush.msra.mxu0 %v386
        %774 = vmatpush.msra.mxu0 %v382
        %775 = vmatpush.msra.mxu0 %v378
        %776 = vmatpush.msra.mxu0 %v374
        %777 = vmatpush.msra.mxu0 %v370
        %778 = vmatpush.msra.mxu0 %v366
        %779 = vmatpush.msra.mxu0 %v362
        %780 = vmatpush.msra.mxu0 %v358
        %781 = vmatpush.msra.mxu0 %v354
        %782 = vmatpush.msra.mxu0 %v350
        %783 = vmatpush.msra.mxu0 %v346
        %784 = vmatpush.msra.mxu0 %v342
        %785 = vmatmul.f32.gmra.mxu0 %v477
        %v786 = vpop.f32.mrf.mxu0
        %v787 = vadd.f32 0.0, %v786
        %788 = vmatmul.f32.gmra.mxu0 %v480
        %v789 = vpop.f32.mrf.mxu0
        %v790 = vadd.f32 0.0, %v789
        %791 = vmatmul.f32.gmra.mxu0 %v483
        %v792 = vpop.f32.mrf.mxu0
        %v793 = vadd.f32 0.0, %v792
        %794 = vmatmul.f32.gmra.mxu0 %v486
        %v795 = vpop.f32.mrf.mxu0
        %v796 = vadd.f32 0.0, %v795
        %797 = vmatmul.f32.gmra.mxu0 %v489
        %v798 = vpop.f32.mrf.mxu0
        %v799 = vadd.f32 0.0, %v798
        %800 = vmatmul.f32.gmra.mxu0 %v492
        %v801 = vpop.f32.mrf.mxu0
        %v802 = vadd.f32 0.0, %v801
        %803 = vmatmul.f32.gmra.mxu0 %v495
        %v804 = vpop.f32.mrf.mxu0
        %v805 = vadd.f32 0.0, %v804
        %806 = vmatmul.f32.gmra.mxu0 %v498
        %v807 = vpop.f32.mrf.mxu0
        %v808 = vadd.f32 0.0, %v807
        %809 = vmatmul.f32.gmra.mxu0 %v501
        %v810 = vpop.f32.mrf.mxu0
        %v811 = vadd.f32 0.0, %v810
        %812 = vmatmul.f32.gmra.mxu0 %v504
        %v813 = vpop.f32.mrf.mxu0
        %v814 = vadd.f32 0.0, %v813
        %815 = vmatmul.f32.gmra.mxu0 %v507
        %v816 = vpop.f32.mrf.mxu0
        %v817 = vadd.f32 0.0, %v816
        %818 = vmatmul.f32.gmra.mxu0 %v510
        %v819 = vpop.f32.mrf.mxu0
        %v820 = vadd.f32 0.0, %v819
        %821 = vmatmul.f32.gmra.mxu0 %v513
        %v822 = vpop.f32.mrf.mxu0
        %v823 = vadd.f32 0.0, %v822
        %824 = vmatmul.f32.gmra.mxu0 %v516
        %v825 = vpop.f32.mrf.mxu0
        %v826 = vadd.f32 0.0, %v825
        %827 = vmatmul.f32.gmra.mxu0 %v519
        %v828 = vpop.f32.mrf.mxu0
        %v829 = vadd.f32 0.0, %v828
        %830 = vmatmul.f32.gmra.mxu0 %v522
        %v831 = vpop.f32.mrf.mxu0
        %v832 = vadd.f32 0.0, %v831
        %833 = vdwg.mxu0
        %834 = vmatpush.msra.mxu0 %v466
        %835 = vmatpush.msra.mxu0 %v462
        %836 = vmatpush.msra.mxu0 %v458
        %837 = vmatpush.msra.mxu0 %v454
        %838 = vmatpush.msra.mxu0 %v450
        %839 = vmatpush.msra.mxu0 %v446
        %840 = vmatpush.msra.mxu0 %v442
        %841 = vmatpush.msra.mxu0 %v438
        %842 = vmatpush.msra.mxu0 %v434
        %843 = vmatpush.msra.mxu0 %v430
        %844 = vmatpush.msra.mxu0 %v426
        %845 = vmatpush.msra.mxu0 %v422
        %846 = vmatpush.msra.mxu0 %v418
        %847 = vmatpush.msra.mxu0 %v414
        %848 = vmatpush.msra.mxu0 %v410
        %849 = vmatpush.msra.mxu0 %v406
        %850 = vmatmul.f32.gmra.mxu0 %v478
        %v851 = vpop.f32.mrf.mxu0
        %v852 = vadd.f32 %v787, %v851
        %853 = vmatmul.f32.gmra.mxu0 %v481
        %v854 = vpop.f32.mrf.mxu0
        %v855 = vadd.f32 %v790, %v854
        %856 = vmatmul.f32.gmra.mxu0 %v484
        %v857 = vpop.f32.mrf.mxu0
        %v858 = vadd.f32 %v793, %v857
        %859 = vmatmul.f32.gmra.mxu0 %v487
        %v860 = vpop.f32.mrf.mxu0
        %v861 = vadd.f32 %v796, %v860
        %862 = vmatmul.f32.gmra.mxu0 %v490
        %v863 = vpop.f32.mrf.mxu0
        %v864 = vadd.f32 %v799, %v863
        %865 = vmatmul.f32.gmra.mxu0 %v493
        %v866 = vpop.f32.mrf.mxu0
        %v867 = vadd.f32 %v802, %v866
        %868 = vmatmul.f32.gmra.mxu0 %v496
        %v869 = vpop.f32.mrf.mxu0
        %v870 = vadd.f32 %v805, %v869
        %871 = vmatmul.f32.gmra.mxu0 %v499
        %v872 = vpop.f32.mrf.mxu0
        %v873 = vadd.f32 %v808, %v872
        %874 = vmatmul.f32.gmra.mxu0 %v502
        %v875 = vpop.f32.mrf.mxu0
        %v876 = vadd.f32 %v811, %v875
        %877 = vmatmul.f32.gmra.mxu0 %v505
        %v878 = vpop.f32.mrf.mxu0
        %v879 = vadd.f32 %v814, %v878
        %880 = vmatmul.f32.gmra.mxu0 %v508
        %v881 = vpop.f32.mrf.mxu0
        %v882 = vadd.f32 %v817, %v881
        %883 = vmatmul.f32.gmra.mxu0 %v511
        %v884 = vpop.f32.mrf.mxu0
        %v885 = vadd.f32 %v820, %v884
        %886 = vmatmul.f32.gmra.mxu0 %v514
        %v887 = vpop.f32.mrf.mxu0
        %v888 = vadd.f32 %v823, %v887
        %889 = vmatmul.f32.gmra.mxu0 %v517
        %v890 = vpop.f32.mrf.mxu0
        %v891 = vadd.f32 %v826, %v890
        %892 = vmatmul.f32.gmra.mxu0 %v520
        %v893 = vpop.f32.mrf.mxu0
        %v894 = vadd.f32 %v829, %v893
        %895 = vmatmul.f32.gmra.mxu0 %v523
        %v896 = vpop.f32.mrf.mxu0
        %v897 = vadd.f32 %v832, %v896
        %898 = vdwg.mxu0
        %899 = vmatpush.msra.mxu0 0.0
        %900 = vmatpush.msra.mxu0 0.0
        %901 = vmatpush.msra.mxu0 0.0
        %902 = vmatpush.msra.mxu0 0.0
        %903 = vmatpush.msra.mxu0 0.0
        %904 = vmatpush.msra.mxu0 0.0
        %905 = vmatpush.msra.mxu0 0.0
        %906 = vmatpush.msra.mxu0 0.0
        %907 = vmatpush.msra.mxu0 0.0
        %908 = vmatpush.msra.mxu0 0.0
        %909 = vmatpush.msra.mxu0 0.0
        %910 = vmatpush.msra.mxu0 0.0
        %911 = vmatpush.msra.mxu0 0.0
        %912 = vmatpush.msra.mxu0 0.0
        %913 = vmatpush.msra.mxu0 %v474
        %914 = vmatpush.msra.mxu0 %v470
        %915 = vmatmul.f32.gmra.mxu0 %v527
        %v916 = vpop.f32.mrf.mxu0
        %v917 = vadd.f32 %v852, %v916
        %918 = vmatmul.f32.gmra.mxu0 %v530
        %v919 = vpop.f32.mrf.mxu0
        %v920 = vadd.f32 %v855, %v919
        %921 = vmatmul.f32.gmra.mxu0 %v533
        %v922 = vpop.f32.mrf.mxu0
        %v923 = vadd.f32 %v858, %v922
        %924 = vmatmul.f32.gmra.mxu0 %v536
        %v925 = vpop.f32.mrf.mxu0
        %v926 = vadd.f32 %v861, %v925
        %927 = vmatmul.f32.gmra.mxu0 %v539
        %v928 = vpop.f32.mrf.mxu0
        %v929 = vadd.f32 %v864, %v928
        %930 = vmatmul.f32.gmra.mxu0 %v542
        %v931 = vpop.f32.mrf.mxu0
        %v932 = vadd.f32 %v867, %v931
        %933 = vmatmul.f32.gmra.mxu0 %v545
        %v934 = vpop.f32.mrf.mxu0
        %v935 = vadd.f32 %v870, %v934
        %936 = vmatmul.f32.gmra.mxu0 %v548
        %v937 = vpop.f32.mrf.mxu0
        %v938 = vadd.f32 %v873, %v937
        %939 = vmatmul.f32.gmra.mxu0 %v551
        %v940 = vpop.f32.mrf.mxu0
        %v941 = vadd.f32 %v876, %v940
        %942 = vmatmul.f32.gmra.mxu0 %v554
        %v943 = vpop.f32.mrf.mxu0
        %v944 = vadd.f32 %v879, %v943
        %945 = vmatmul.f32.gmra.mxu0 %v557
        %v946 = vpop.f32.mrf.mxu0
        %v947 = vadd.f32 %v882, %v946
        %948 = vmatmul.f32.gmra.mxu0 %v560
        %v949 = vpop.f32.mrf.mxu0
        %v950 = vadd.f32 %v885, %v949
        %951 = vmatmul.f32.gmra.mxu0 %v563
        %v952 = vpop.f32.mrf.mxu0
        %v953 = vadd.f32 %v888, %v952
        %954 = vmatmul.f32.gmra.mxu0 %v566
        %v955 = vpop.f32.mrf.mxu0
        %v956 = vadd.f32 %v891, %v955
        %957 = vmatmul.f32.gmra.mxu0 %v569
        %v958 = vpop.f32.mrf.mxu0
        %v959 = vadd.f32 %v894, %v958
        %960 = vmatmul.f32.gmra.mxu0 %v572
        %v961 = vpop.f32.mrf.mxu0
        %v962 = vadd.f32 %v897, %v961
        %963 = vdwg.mxu0
        %964 = vmatpush.msra.mxu0 %v403
        %965 = vmatpush.msra.mxu0 %v399
        %966 = vmatpush.msra.mxu0 %v395
        %967 = vmatpush.msra.mxu0 %v391
        %968 = vmatpush.msra.mxu0 %v387
        %969 = vmatpush.msra.mxu0 %v383
        %970 = vmatpush.msra.mxu0 %v379
        %971 = vmatpush.msra.mxu0 %v375
        %972 = vmatpush.msra.mxu0 %v371
        %973 = vmatpush.msra.mxu0 %v367
        %974 = vmatpush.msra.mxu0 %v363
        %975 = vmatpush.msra.mxu0 %v359
        %976 = vmatpush.msra.mxu0 %v355
        %977 = vmatpush.msra.mxu0 %v351
        %978 = vmatpush.msra.mxu0 %v347
        %979 = vmatpush.msra.mxu0 %v343
        %980 = vmatmul.f32.gmra.mxu0 %v477
        %v981 = vpop.f32.mrf.mxu0
        %v982 = vadd.f32 0.0, %v981
        %983 = vmatmul.f32.gmra.mxu0 %v480
        %v984 = vpop.f32.mrf.mxu0
        %v985 = vadd.f32 0.0, %v984
        %986 = vmatmul.f32.gmra.mxu0 %v483
        %v987 = vpop.f32.mrf.mxu0
        %v988 = vadd.f32 0.0, %v987
        %989 = vmatmul.f32.gmra.mxu0 %v486
        %v990 = vpop.f32.mrf.mxu0
        %v991 = vadd.f32 0.0, %v990
        %992 = vmatmul.f32.gmra.mxu0 %v489
        %v993 = vpop.f32.mrf.mxu0
        %v994 = vadd.f32 0.0, %v993
        %995 = vmatmul.f32.gmra.mxu0 %v492
        %v996 = vpop.f32.mrf.mxu0
        %v997 = vadd.f32 0.0, %v996
        %998 = vmatmul.f32.gmra.mxu0 %v495
        %v999 = vpop.f32.mrf.mxu0
        %v1000 = vadd.f32 0.0, %v999
        %1001 = vmatmul.f32.gmra.mxu0 %v498
        %v1002 = vpop.f32.mrf.mxu0
        %v1003 = vadd.f32 0.0, %v1002
        %1004 = vmatmul.f32.gmra.mxu0 %v501
        %v1005 = vpop.f32.mrf.mxu0
        %v1006 = vadd.f32 0.0, %v1005
        %1007 = vmatmul.f32.gmra.mxu0 %v504
        %v1008 = vpop.f32.mrf.mxu0
        %v1009 = vadd.f32 0.0, %v1008
        %1010 = vmatmul.f32.gmra.mxu0 %v507
        %v1011 = vpop.f32.mrf.mxu0
        %v1012 = vadd.f32 0.0, %v1011
        %1013 = vmatmul.f32.gmra.mxu0 %v510
        %v1014 = vpop.f32.mrf.mxu0
        %v1015 = vadd.f32 0.0, %v1014
        %1016 = vmatmul.f32.gmra.mxu0 %v513
        %v1017 = vpop.f32.mrf.mxu0
        %v1018 = vadd.f32 0.0, %v1017
        %1019 = vmatmul.f32.gmra.mxu0 %v516
        %v1020 = vpop.f32.mrf.mxu0
        %v1021 = vadd.f32 0.0, %v1020
        %1022 = vmatmul.f32.gmra.mxu0 %v519
        %v1023 = vpop.f32.mrf.mxu0
        %v1024 = vadd.f32 0.0, %v1023
        %1025 = vmatmul.f32.gmra.mxu0 %v522
        %v1026 = vpop.f32.mrf.mxu0
        %v1027 = vadd.f32 0.0, %v1026
        %1028 = vdwg.mxu0
        %1029 = vmatpush.msra.mxu0 %v467
        %1030 = vmatpush.msra.mxu0 %v463
        %1031 = vmatpush.msra.mxu0 %v459
        %1032 = vmatpush.msra.mxu0 %v455
        %1033 = vmatpush.msra.mxu0 %v451
        %1034 = vmatpush.msra.mxu0 %v447
        %1035 = vmatpush.msra.mxu0 %v443
        %1036 = vmatpush.msra.mxu0 %v439
        %1037 = vmatpush.msra.mxu0 %v435
        %1038 = vmatpush.msra.mxu0 %v431
        %1039 = vmatpush.msra.mxu0 %v427
        %1040 = vmatpush.msra.mxu0 %v423
        %1041 = vmatpush.msra.mxu0 %v419
        %1042 = vmatpush.msra.mxu0 %v415
        %1043 = vmatpush.msra.mxu0 %v411
        %1044 = vmatpush.msra.mxu0 %v407
        %1045 = vmatmul.f32.gmra.mxu0 %v478
        %v1046 = vpop.f32.mrf.mxu0
        %v1047 = vadd.f32 %v982, %v1046
        %1048 = vmatmul.f32.gmra.mxu0 %v481
        %v1049 = vpop.f32.mrf.mxu0
        %v1050 = vadd.f32 %v985, %v1049
        %1051 = vmatmul.f32.gmra.mxu0 %v484
        %v1052 = vpop.f32.mrf.mxu0
        %v1053 = vadd.f32 %v988, %v1052
        %1054 = vmatmul.f32.gmra.mxu0 %v487
        %v1055 = vpop.f32.mrf.mxu0
        %v1056 = vadd.f32 %v991, %v1055
        %1057 = vmatmul.f32.gmra.mxu0 %v490
        %v1058 = vpop.f32.mrf.mxu0
        %v1059 = vadd.f32 %v994, %v1058
        %1060 = vmatmul.f32.gmra.mxu0 %v493
        %v1061 = vpop.f32.mrf.mxu0
        %v1062 = vadd.f32 %v997, %v1061
        %1063 = vmatmul.f32.gmra.mxu0 %v496
        %v1064 = vpop.f32.mrf.mxu0
        %v1065 = vadd.f32 %v1000, %v1064
        %1066 = vmatmul.f32.gmra.mxu0 %v499
        %v1067 = vpop.f32.mrf.mxu0
        %v1068 = vadd.f32 %v1003, %v1067
        %1069 = vmatmul.f32.gmra.mxu0 %v502
        %v1070 = vpop.f32.mrf.mxu0
        %v1071 = vadd.f32 %v1006, %v1070
        %1072 = vmatmul.f32.gmra.mxu0 %v505
        %v1073 = vpop.f32.mrf.mxu0
        %v1074 = vadd.f32 %v1009, %v1073
        %1075 = vmatmul.f32.gmra.mxu0 %v508
        %v1076 = vpop.f32.mrf.mxu0
        %v1077 = vadd.f32 %v1012, %v1076
        %1078 = vmatmul.f32.gmra.mxu0 %v511
        %v1079 = vpop.f32.mrf.mxu0
        %v1080 = vadd.f32 %v1015, %v1079
        %1081 = vmatmul.f32.gmra.mxu0 %v514
        %v1082 = vpop.f32.mrf.mxu0
        %v1083 = vadd.f32 %v1018, %v1082
        %1084 = vmatmul.f32.gmra.mxu0 %v517
        %v1085 = vpop.f32.mrf.mxu0
        %v1086 = vadd.f32 %v1021, %v1085
        %1087 = vmatmul.f32.gmra.mxu0 %v520
        %v1088 = vpop.f32.mrf.mxu0
        %v1089 = vadd.f32 %v1024, %v1088
        %1090 = vmatmul.f32.gmra.mxu0 %v523
        %v1091 = vpop.f32.mrf.mxu0
        %v1092 = vadd.f32 %v1027, %v1091
        %1093 = vdwg.mxu0
        %1094 = vmatpush.msra.mxu0 0.0
        %1095 = vmatpush.msra.mxu0 0.0
        %1096 = vmatpush.msra.mxu0 0.0
        %1097 = vmatpush.msra.mxu0 0.0
        %1098 = vmatpush.msra.mxu0 0.0
        %1099 = vmatpush.msra.mxu0 0.0
        %1100 = vmatpush.msra.mxu0 0.0
        %1101 = vmatpush.msra.mxu0 0.0
        %1102 = vmatpush.msra.mxu0 0.0
        %1103 = vmatpush.msra.mxu0 0.0
        %1104 = vmatpush.msra.mxu0 0.0
        %1105 = vmatpush.msra.mxu0 0.0
        %1106 = vmatpush.msra.mxu0 0.0
        %1107 = vmatpush.msra.mxu0 0.0
        %1108 = vmatpush.msra.mxu0 %v475
        %1109 = vmatpush.msra.mxu0 %v471
        %1110 = vmatmul.f32.gmra.mxu0 %v527
        %v1111 = vpop.f32.mrf.mxu0
        %v1112 = vadd.f32 %v1047, %v1111
        %1113 = vmatmul.f32.gmra.mxu0 %v530
        %v1114 = vpop.f32.mrf.mxu0
        %v1115 = vadd.f32 %v1050, %v1114
        %1116 = vmatmul.f32.gmra.mxu0 %v533
        %v1117 = vpop.f32.mrf.mxu0
        %v1118 = vadd.f32 %v1053, %v1117
        %1119 = vmatmul.f32.gmra.mxu0 %v536
        %v1120 = vpop.f32.mrf.mxu0
        %v1121 = vadd.f32 %v1056, %v1120
        %1122 = vmatmul.f32.gmra.mxu0 %v539
        %v1123 = vpop.f32.mrf.mxu0
        %v1124 = vadd.f32 %v1059, %v1123
        %1125 = vmatmul.f32.gmra.mxu0 %v542
        %v1126 = vpop.f32.mrf.mxu0
        %v1127 = vadd.f32 %v1062, %v1126
        %1128 = vmatmul.f32.gmra.mxu0 %v545
        %v1129 = vpop.f32.mrf.mxu0
        %v1130 = vadd.f32 %v1065, %v1129
        %1131 = vmatmul.f32.gmra.mxu0 %v548
        %v1132 = vpop.f32.mrf.mxu0
        %v1133 = vadd.f32 %v1068, %v1132
        %1134 = vmatmul.f32.gmra.mxu0 %v551
        %v1135 = vpop.f32.mrf.mxu0
        %v1136 = vadd.f32 %v1071, %v1135
        %1137 = vmatmul.f32.gmra.mxu0 %v554
        %v1138 = vpop.f32.mrf.mxu0
        %v1139 = vadd.f32 %v1074, %v1138
        %1140 = vmatmul.f32.gmra.mxu0 %v557
        %v1141 = vpop.f32.mrf.mxu0
        %v1142 = vadd.f32 %v1077, %v1141
        %1143 = vmatmul.f32.gmra.mxu0 %v560
        %v1144 = vpop.f32.mrf.mxu0
        %v1145 = vadd.f32 %v1080, %v1144
        %1146 = vmatmul.f32.gmra.mxu0 %v563
        %v1147 = vpop.f32.mrf.mxu0
        %v1148 = vadd.f32 %v1083, %v1147
        %1149 = vmatmul.f32.gmra.mxu0 %v566
        %v1150 = vpop.f32.mrf.mxu0
        %v1151 = vadd.f32 %v1086, %v1150
        %1152 = vmatmul.f32.gmra.mxu0 %v569
        %v1153 = vpop.f32.mrf.mxu0
        %v1154 = vadd.f32 %v1089, %v1153
        %1155 = vmatmul.f32.gmra.mxu0 %v572
        %v1156 = vpop.f32.mrf.mxu0
        %v1157 = vadd.f32 %v1092, %v1156
        %1158 = vdwg.mxu0
        %1159 = vmatpush.msra.mxu0 %v404
        %1160 = vmatpush.msra.mxu0 %v400
        %1161 = vmatpush.msra.mxu0 %v396
        %1162 = vmatpush.msra.mxu0 %v392
        %1163 = vmatpush.msra.mxu0 %v388
        %1164 = vmatpush.msra.mxu0 %v384
        %1165 = vmatpush.msra.mxu0 %v380
        %1166 = vmatpush.msra.mxu0 %v376
        %1167 = vmatpush.msra.mxu0 %v372
        %1168 = vmatpush.msra.mxu0 %v368
        %1169 = vmatpush.msra.mxu0 %v364
        %1170 = vmatpush.msra.mxu0 %v360
        %1171 = vmatpush.msra.mxu0 %v356
        %1172 = vmatpush.msra.mxu0 %v352
        %1173 = vmatpush.msra.mxu0 %v348
        %1174 = vmatpush.msra.mxu0 %v344
        %1175 = vmatmul.f32.gmra.mxu0 %v477
        %v1176 = vpop.f32.mrf.mxu0
        %v1177 = vadd.f32 0.0, %v1176
        %1178 = vmatmul.f32.gmra.mxu0 %v480
        %v1179 = vpop.f32.mrf.mxu0
        %v1180 = vadd.f32 0.0, %v1179
        %1181 = vmatmul.f32.gmra.mxu0 %v483
        %v1182 = vpop.f32.mrf.mxu0
        %v1183 = vadd.f32 0.0, %v1182
        %1184 = vmatmul.f32.gmra.mxu0 %v486
        %v1185 = vpop.f32.mrf.mxu0
        %v1186 = vadd.f32 0.0, %v1185
        %1187 = vmatmul.f32.gmra.mxu0 %v489
        %v1188 = vpop.f32.mrf.mxu0
        %v1189 = vadd.f32 0.0, %v1188
        %1190 = vmatmul.f32.gmra.mxu0 %v492
        %v1191 = vpop.f32.mrf.mxu0
        %v1192 = vadd.f32 0.0, %v1191
        %1193 = vmatmul.f32.gmra.mxu0 %v495
        %v1194 = vpop.f32.mrf.mxu0
        %v1195 = vadd.f32 0.0, %v1194
        %1196 = vmatmul.f32.gmra.mxu0 %v498
        %v1197 = vpop.f32.mrf.mxu0
        %v1198 = vadd.f32 0.0, %v1197
        %1199 = vmatmul.f32.gmra.mxu0 %v501
        %v1200 = vpop.f32.mrf.mxu0
        %v1201 = vadd.f32 0.0, %v1200
        %1202 = vmatmul.f32.gmra.mxu0 %v504
        %v1203 = vpop.f32.mrf.mxu0
        %v1204 = vadd.f32 0.0, %v1203
        %1205 = vmatmul.f32.gmra.mxu0 %v507
        %v1206 = vpop.f32.mrf.mxu0
        %v1207 = vadd.f32 0.0, %v1206
        %1208 = vmatmul.f32.gmra.mxu0 %v510
        %v1209 = vpop.f32.mrf.mxu0
        %v1210 = vadd.f32 0.0, %v1209
        %1211 = vmatmul.f32.gmra.mxu0 %v513
        %v1212 = vpop.f32.mrf.mxu0
        %v1213 = vadd.f32 0.0, %v1212
        %1214 = vmatmul.f32.gmra.mxu0 %v516
        %v1215 = vpop.f32.mrf.mxu0
        %v1216 = vadd.f32 0.0, %v1215
        %1217 = vmatmul.f32.gmra.mxu0 %v519
        %v1218 = vpop.f32.mrf.mxu0
        %v1219 = vadd.f32 0.0, %v1218
        %1220 = vmatmul.f32.gmra.mxu0 %v522
        %v1221 = vpop.f32.mrf.mxu0
        %v1222 = vadd.f32 0.0, %v1221
        %1223 = vdwg.mxu0
        %1224 = vmatpush.msra.mxu0 %v468
        %1225 = vmatpush.msra.mxu0 %v464
        %1226 = vmatpush.msra.mxu0 %v460
        %1227 = vmatpush.msra.mxu0 %v456
        %1228 = vmatpush.msra.mxu0 %v452
        %1229 = vmatpush.msra.mxu0 %v448
        %1230 = vmatpush.msra.mxu0 %v444
        %1231 = vmatpush.msra.mxu0 %v440
        %1232 = vmatpush.msra.mxu0 %v436
        %1233 = vmatpush.msra.mxu0 %v432
        %1234 = vmatpush.msra.mxu0 %v428
        %1235 = vmatpush.msra.mxu0 %v424
        %1236 = vmatpush.msra.mxu0 %v420
        %1237 = vmatpush.msra.mxu0 %v416
        %1238 = vmatpush.msra.mxu0 %v412
        %1239 = vmatpush.msra.mxu0 %v408
        %1240 = vmatmul.f32.gmra.mxu0 %v478
        %v1241 = vpop.f32.mrf.mxu0
        %v1242 = vadd.f32 %v1177, %v1241
        %1243 = vmatmul.f32.gmra.mxu0 %v481
        %v1244 = vpop.f32.mrf.mxu0
        %v1245 = vadd.f32 %v1180, %v1244
        %1246 = vmatmul.f32.gmra.mxu0 %v484
        %v1247 = vpop.f32.mrf.mxu0
        %v1248 = vadd.f32 %v1183, %v1247
        %1249 = vmatmul.f32.gmra.mxu0 %v487
        %v1250 = vpop.f32.mrf.mxu0
        %v1251 = vadd.f32 %v1186, %v1250
        %1252 = vmatmul.f32.gmra.mxu0 %v490
        %v1253 = vpop.f32.mrf.mxu0
        %v1254 = vadd.f32 %v1189, %v1253
        %1255 = vmatmul.f32.gmra.mxu0 %v493
        %v1256 = vpop.f32.mrf.mxu0
        %v1257 = vadd.f32 %v1192, %v1256
        %1258 = vmatmul.f32.gmra.mxu0 %v496
        %v1259 = vpop.f32.mrf.mxu0
        %v1260 = vadd.f32 %v1195, %v1259
        %1261 = vmatmul.f32.gmra.mxu0 %v499
        %v1262 = vpop.f32.mrf.mxu0
        %v1263 = vadd.f32 %v1198, %v1262
        %1264 = vmatmul.f32.gmra.mxu0 %v502
        %v1265 = vpop.f32.mrf.mxu0
        %v1266 = vadd.f32 %v1201, %v1265
        %1267 = vmatmul.f32.gmra.mxu0 %v505
        %v1268 = vpop.f32.mrf.mxu0
        %v1269 = vadd.f32 %v1204, %v1268
        %1270 = vmatmul.f32.gmra.mxu0 %v508
        %v1271 = vpop.f32.mrf.mxu0
        %v1272 = vadd.f32 %v1207, %v1271
        %1273 = vmatmul.f32.gmra.mxu0 %v511
        %v1274 = vpop.f32.mrf.mxu0
        %v1275 = vadd.f32 %v1210, %v1274
        %1276 = vmatmul.f32.gmra.mxu0 %v514
        %v1277 = vpop.f32.mrf.mxu0
        %v1278 = vadd.f32 %v1213, %v1277
        %1279 = vmatmul.f32.gmra.mxu0 %v517
        %v1280 = vpop.f32.mrf.mxu0
        %v1281 = vadd.f32 %v1216, %v1280
        %1282 = vmatmul.f32.gmra.mxu0 %v520
        %v1283 = vpop.f32.mrf.mxu0
        %v1284 = vadd.f32 %v1219, %v1283
        %1285 = vmatmul.f32.gmra.mxu0 %v523
        %v1286 = vpop.f32.mrf.mxu0
        %v1287 = vadd.f32 %v1222, %v1286
        %1288 = vdwg.mxu0
        %1289 = vmatpush.msra.mxu0 0.0
        %1290 = vmatpush.msra.mxu0 0.0
        %1291 = vmatpush.msra.mxu0 0.0
        %1292 = vmatpush.msra.mxu0 0.0
        %1293 = vmatpush.msra.mxu0 0.0
        %1294 = vmatpush.msra.mxu0 0.0
        %1295 = vmatpush.msra.mxu0 0.0
        %1296 = vmatpush.msra.mxu0 0.0
        %1297 = vmatpush.msra.mxu0 0.0
        %1298 = vmatpush.msra.mxu0 0.0
        %1299 = vmatpush.msra.mxu0 0.0
        %1300 = vmatpush.msra.mxu0 0.0
        %1301 = vmatpush.msra.mxu0 0.0
        %1302 = vmatpush.msra.mxu0 0.0
        %1303 = vmatpush.msra.mxu0 %v476
        %1304 = vmatpush.msra.mxu0 %v472
        %1305 = vmatmul.f32.gmra.mxu0 %v527
        %v1306 = vpop.f32.mrf.mxu0
        %v1307 = vadd.f32 %v1242, %v1306
        %1308 = vmatmul.f32.gmra.mxu0 %v530
        %v1309 = vpop.f32.mrf.mxu0
        %v1310 = vadd.f32 %v1245, %v1309
        %1311 = vmatmul.f32.gmra.mxu0 %v533
        %v1312 = vpop.f32.mrf.mxu0
        %v1313 = vadd.f32 %v1248, %v1312
        %1314 = vmatmul.f32.gmra.mxu0 %v536
        %v1315 = vpop.f32.mrf.mxu0
        %v1316 = vadd.f32 %v1251, %v1315
        %1317 = vmatmul.f32.gmra.mxu0 %v539
        %v1318 = vpop.f32.mrf.mxu0
        %v1319 = vadd.f32 %v1254, %v1318
        %1320 = vmatmul.f32.gmra.mxu0 %v542
        %v1321 = vpop.f32.mrf.mxu0
        %v1322 = vadd.f32 %v1257, %v1321
        %1323 = vmatmul.f32.gmra.mxu0 %v545
        %v1324 = vpop.f32.mrf.mxu0
        %v1325 = vadd.f32 %v1260, %v1324
        %1326 = vmatmul.f32.gmra.mxu0 %v548
        %v1327 = vpop.f32.mrf.mxu0
        %v1328 = vadd.f32 %v1263, %v1327
        %1329 = vmatmul.f32.gmra.mxu0 %v551
        %v1330 = vpop.f32.mrf.mxu0
        %v1331 = vadd.f32 %v1266, %v1330
        %1332 = vmatmul.f32.gmra.mxu0 %v554
        %v1333 = vpop.f32.mrf.mxu0
        %v1334 = vadd.f32 %v1269, %v1333
        %1335 = vmatmul.f32.gmra.mxu0 %v557
        %v1336 = vpop.f32.mrf.mxu0
        %v1337 = vadd.f32 %v1272, %v1336
        %1338 = vmatmul.f32.gmra.mxu0 %v560
        %v1339 = vpop.f32.mrf.mxu0
        %v1340 = vadd.f32 %v1275, %v1339
        %1341 = vmatmul.f32.gmra.mxu0 %v563
        %v1342 = vpop.f32.mrf.mxu0
        %v1343 = vadd.f32 %v1278, %v1342
        %1344 = vmatmul.f32.gmra.mxu0 %v566
        %v1345 = vpop.f32.mrf.mxu0
        %v1346 = vadd.f32 %v1281, %v1345
        %1347 = vmatmul.f32.gmra.mxu0 %v569
        %v1348 = vpop.f32.mrf.mxu0
        %v1349 = vadd.f32 %v1284, %v1348
        %1350 = vmatmul.f32.gmra.mxu0 %v572
        %v1351 = vpop.f32.mrf.mxu0
        %v1352 = vadd.f32 %v1287, %v1351
        %1353 = vdwg.mxu0
        %v1354 = vld [vmem:[%s337] sm:$0xff]
        %v1355 = vld [vmem:[%s337 + $0x8] sm:$0xff]
        %v1358 = vperm.slane %v1354, 0
        %v1359 = vperm.slane %v1354, 4
        %v1360 = vperm.slane %v1355, 0
        %v1361 = vperm.slane %v1355, 4
        %v1366 = vperm.slane %v1358, 0
        %v1367 = vperm.slane %v1359, 0
        %v1368 = vperm.slane %v1360, 0
        %v1369 = vperm.slane %v1361, 0
        %v1370 = vmul.f32 %v722, %v1366
        %v1371 = vmul.f32 %v917, %v1367
        %v1372 = vmul.f32 %v1112, %v1368
        %v1373 = vmul.f32 %v1307, %v1369
        %v1374 = vmul.f32 %v725, %v1366
        %v1375 = vmul.f32 %v920, %v1367
        %v1376 = vmul.f32 %v1115, %v1368
        %v1377 = vmul.f32 %v1310, %v1369
        %v1378 = vmul.f32 %v728, %v1366
        %v1379 = vmul.f32 %v923, %v1367
        %v1380 = vmul.f32 %v1118, %v1368
        %v1381 = vmul.f32 %v1313, %v1369
        %v1382 = vmul.f32 %v731, %v1366
        %v1383 = vmul.f32 %v926, %v1367
        %v1384 = vmul.f32 %v1121, %v1368
        %v1385 = vmul.f32 %v1316, %v1369
        %v1386 = vperm.slane %v1354, 1
        %v1387 = vperm.slane %v1354, 5
        %v1388 = vperm.slane %v1355, 1
        %v1389 = vperm.slane %v1355, 5
        %v1394 = vperm.slane %v1386, 1
        %v1395 = vperm.slane %v1387, 1
        %v1396 = vperm.slane %v1388, 1
        %v1397 = vperm.slane %v1389, 1
        %v1398 = vmul.f32 %v734, %v1394
        %v1399 = vmul.f32 %v929, %v1395
        %v1400 = vmul.f32 %v1124, %v1396
        %v1401 = vmul.f32 %v1319, %v1397
        %v1402 = vmul.f32 %v737, %v1394
        %v1403 = vmul.f32 %v932, %v1395
        %v1404 = vmul.f32 %v1127, %v1396
        %v1405 = vmul.f32 %v1322, %v1397
        %v1406 = vmul.f32 %v740, %v1394
        %v1407 = vmul.f32 %v935, %v1395
        %v1408 = vmul.f32 %v1130, %v1396
        %v1409 = vmul.f32 %v1325, %v1397
        %v1410 = vmul.f32 %v743, %v1394
        %v1411 = vmul.f32 %v938, %v1395
        %v1412 = vmul.f32 %v1133, %v1396
        %v1413 = vmul.f32 %v1328, %v1397
        %v1414 = vadd.f32 %v1370, %v1398
        %v1415 = vadd.f32 %v1371, %v1399
        %v1416 = vadd.f32 %v1372, %v1400
        %v1417 = vadd.f32 %v1373, %v1401
        %v1418 = vadd.f32 %v1374, %v1402
        %v1419 = vadd.f32 %v1375, %v1403
        %v1420 = vadd.f32 %v1376, %v1404
        %v1421 = vadd.f32 %v1377, %v1405
        %v1422 = vadd.f32 %v1378, %v1406
        %v1423 = vadd.f32 %v1379, %v1407
        %v1424 = vadd.f32 %v1380, %v1408
        %v1425 = vadd.f32 %v1381, %v1409
        %v1426 = vadd.f32 %v1382, %v1410
        %v1427 = vadd.f32 %v1383, %v1411
        %v1428 = vadd.f32 %v1384, %v1412
        %v1429 = vadd.f32 %v1385, %v1413
        %v1430 = vperm.slane %v1354, 2
        %v1431 = vperm.slane %v1354, 6
        %v1432 = vperm.slane %v1355, 2
        %v1433 = vperm.slane %v1355, 6
        %v1438 = vperm.slane %v1430, 2
        %v1439 = vperm.slane %v1431, 2
        %v1440 = vperm.slane %v1432, 2
        %v1441 = vperm.slane %v1433, 2
        %v1442 = vmul.f32 %v746, %v1438
        %v1443 = vmul.f32 %v941, %v1439
        %v1444 = vmul.f32 %v1136, %v1440
        %v1445 = vmul.f32 %v1331, %v1441
        %v1446 = vmul.f32 %v749, %v1438
        %v1447 = vmul.f32 %v944, %v1439
        %v1448 = vmul.f32 %v1139, %v1440
        %v1449 = vmul.f32 %v1334, %v1441
        %v1450 = vmul.f32 %v752, %v1438
        %v1451 = vmul.f32 %v947, %v1439
        %v1452 = vmul.f32 %v1142, %v1440
        %v1453 = vmul.f32 %v1337, %v1441
        %v1454 = vmul.f32 %v755, %v1438
        %v1455 = vmul.f32 %v950, %v1439
        %v1456 = vmul.f32 %v1145, %v1440
        %v1457 = vmul.f32 %v1340, %v1441
        %v1458 = vadd.f32 %v1414, %v1442
        %v1459 = vadd.f32 %v1415, %v1443
        %v1460 = vadd.f32 %v1416, %v1444
        %v1461 = vadd.f32 %v1417, %v1445
        %v1462 = vadd.f32 %v1418, %v1446
        %v1463 = vadd.f32 %v1419, %v1447
        %v1464 = vadd.f32 %v1420, %v1448
        %v1465 = vadd.f32 %v1421, %v1449
        %v1466 = vadd.f32 %v1422, %v1450
        %v1467 = vadd.f32 %v1423, %v1451
        %v1468 = vadd.f32 %v1424, %v1452
        %v1469 = vadd.f32 %v1425, %v1453
        %v1470 = vadd.f32 %v1426, %v1454
        %v1471 = vadd.f32 %v1427, %v1455
        %v1472 = vadd.f32 %v1428, %v1456
        %v1473 = vadd.f32 %v1429, %v1457
        %v1474 = vperm.slane %v1354, 3
        %v1475 = vperm.slane %v1354, 7
        %v1476 = vperm.slane %v1355, 3
        %v1477 = vperm.slane %v1355, 7
        %v1482 = vperm.slane %v1474, 3
        %v1483 = vperm.slane %v1475, 3
        %v1484 = vperm.slane %v1476, 3
        %v1485 = vperm.slane %v1477, 3
        %v1486 = vmul.f32 %v758, %v1482
        %v1487 = vmul.f32 %v953, %v1483
        %v1488 = vmul.f32 %v1148, %v1484
        %v1489 = vmul.f32 %v1343, %v1485
        %v1490 = vmul.f32 %v761, %v1482
        %v1491 = vmul.f32 %v956, %v1483
        %v1492 = vmul.f32 %v1151, %v1484
        %v1493 = vmul.f32 %v1346, %v1485
        %v1494 = vmul.f32 %v764, %v1482
        %v1495 = vmul.f32 %v959, %v1483
        %v1496 = vmul.f32 %v1154, %v1484
        %v1497 = vmul.f32 %v1349, %v1485
        %v1498 = vmul.f32 %v767, %v1482
        %v1499 = vmul.f32 %v962, %v1483
        %v1500 = vmul.f32 %v1157, %v1484
        %v1501 = vmul.f32 %v1352, %v1485
        %v1502 = vadd.f32 %v1458, %v1486
        %v1503 = vadd.f32 %v1459, %v1487
        %v1504 = vadd.f32 %v1460, %v1488
        %v1505 = vadd.f32 %v1461, %v1489
        %v1506 = vadd.f32 %v1462, %v1490
        %v1507 = vadd.f32 %v1463, %v1491
        %v1508 = vadd.f32 %v1464, %v1492
        %v1509 = vadd.f32 %v1465, %v1493
        %v1510 = vadd.f32 %v1466, %v1494
        %v1511 = vadd.f32 %v1467, %v1495
        %v1512 = vadd.f32 %v1468, %v1496
        %v1513 = vadd.f32 %v1469, %v1497
        %v1514 = vadd.f32 %v1470, %v1498
        %v1515 = vadd.f32 %v1471, %v1499
        %v1516 = vadd.f32 %v1472, %v1500
        %v1517 = vadd.f32 %v1473, %v1501
        %v1518 = vld [vmem:[%s300] sm:$0xff]
        %v1519 = vld [vmem:[%s300 + $0x8] sm:$0xff]
        %v1520 = vld [vmem:[%s300 + $0x10] sm:$0xff]
        %v1521 = vld [vmem:[%s300 + $0x18] sm:$0xff]
        %v1522 = vld [vmem:[%s300 + $0x20] sm:$0xff]
        %v1523 = vld [vmem:[%s300 + $0x28] sm:$0xff]
        %v1524 = vld [vmem:[%s300 + $0x30] sm:$0xff]
        %v1525 = vld [vmem:[%s300 + $0x38] sm:$0xff]
        %v1526 = vld [vmem:[%s300 + $0x40] sm:$0xff]
        %v1527 = vld [vmem:[%s300 + $0x48] sm:$0xff]
        %v1528 = vld [vmem:[%s300 + $0x50] sm:$0xff]
        %v1529 = vld [vmem:[%s300 + $0x58] sm:$0xff]
        %v1530 = vld [vmem:[%s300 + $0x60] sm:$0xff]
        %v1531 = vld [vmem:[%s300 + $0x68] sm:$0xff]
        %v1532 = vld [vmem:[%s300 + $0x70] sm:$0xff]
        %v1533 = vld [vmem:[%s300 + $0x78] sm:$0xff]
        %v1534 = vadd.f32 %v1502, %v1518
        %v1535 = vadd.f32 %v1503, %v1519
        %v1536 = vadd.f32 %v1504, %v1520
        %v1537 = vadd.f32 %v1505, %v1521
        %v1538 = vadd.f32 %v1506, %v1522
        %v1539 = vadd.f32 %v1507, %v1523
        %v1540 = vadd.f32 %v1508, %v1524
        %v1541 = vadd.f32 %v1509, %v1525
        %v1542 = vadd.f32 %v1510, %v1526
        %v1543 = vadd.f32 %v1511, %v1527
        %v1544 = vadd.f32 %v1512, %v1528
        %v1545 = vadd.f32 %v1513, %v1529
        %v1546 = vadd.f32 %v1514, %v1530
        %v1547 = vadd.f32 %v1515, %v1531
        %v1548 = vadd.f32 %v1516, %v1532
        %v1549 = vadd.f32 %v1517, %v1533
        %1550 = vst [vmem:[%s331] sm:$0xff] %v1534
        %1551 = vst [vmem:[%s331 + $0x8] sm:$0xff] %v1535
        %1552 = vst [vmem:[%s331 + $0x10] sm:$0xff] %v1536
        %1553 = vst [vmem:[%s331 + $0x18] sm:$0xff] %v1537
        %1554 = vst [vmem:[%s331 + $0x20] sm:$0xff] %v1538
        %1555 = vst [vmem:[%s331 + $0x28] sm:$0xff] %v1539
        %1556 = vst [vmem:[%s331 + $0x30] sm:$0xff] %v1540
        %1557 = vst [vmem:[%s331 + $0x38] sm:$0xff] %v1541
        %1558 = vst [vmem:[%s331 + $0x40] sm:$0xff] %v1542
        %1559 = vst [vmem:[%s331 + $0x48] sm:$0xff] %v1543
        %1560 = vst [vmem:[%s331 + $0x50] sm:$0xff] %v1544
        %1561 = vst [vmem:[%s331 + $0x58] sm:$0xff] %v1545
        %1562 = vst [vmem:[%s331 + $0x60] sm:$0xff] %v1546
        %1563 = vst [vmem:[%s331 + $0x68] sm:$0xff] %v1547
        %1564 = vst [vmem:[%s331 + $0x70] sm:$0xff] %v1548
        %1565 = vst [vmem:[%s331 + $0x78] sm:$0xff] %v1549
        %s1566 = sand.u32 %s125, 1
        %s1567 = scalar_lea.sflag [#allocation5], %s1566
        %s1568 = sand.u32 %s125, 1
        %s1569 = smul.addr %s1568, 128
        %s1570 = scalar_lea.vmem [#allocation4], %s1569
        // Predicated region
        $region83: #{tpu_custom_call.1} parent=73 // pred_check
          %p1571 = pneg %p135
        $region84: #{tpu_custom_call.1} parent=73 // pred_check_branch
          %1573 = sbr.rel (%p1571) target = $region86
        $region85: #{tpu_custom_call.1} parent=73 // pred_region
          %s1574 = smul.u32 4, %s18
          %1576 = vsyncadd %s1567, 0
          %s1577 = smul.addr %s1574, 8
          %s1578 = scalar_lea.hbm %s4, %s1577
          %s1579 = sshll.u32 %s1570, 4
          %s1580 = int_to_ptr.vmem [resolvable:$true] %s1579
          %s1581 = sshll.u32 %s1578, 4
          %s1582 = int_to_ptr.hbm [resolvable:$true] %s1581
          %1587 = dma.vmem_to_hbm [thread:$0]  %s1580, 2048, %s1582, %s1567, 512, 1024, 32
        $region86: #{tpu_custom_call.1} parent=73 // pred_fallthru
          _
      $region74: #{tpu_custom_call.1} parent=5 // pred_fallthru
        _
      %p1588 = scmp.le.s32.totalorder 2, %s13
      // Predicated region
      $region87: #{tpu_custom_call.1} parent=5 // pred_check
        %p1589 = pneg %p1588
      $region88: #{tpu_custom_call.1} parent=5 // pred_check_branch
        %1591 = sbr.rel (%p1589) target = $region90
      $region89: #{tpu_custom_call.1} parent=5 // pred_region
        %s1592 = ssub.s32 %s13, 2
        // Predicated region
        $region91: #{tpu_custom_call.1} parent=89 // pred_check
          %p1593 = pneg %p141
        $region92: #{tpu_custom_call.1} parent=89 // pred_check_branch
          %1595 = sbr.rel (%p1593) target = $region94
        $region93: #{tpu_custom_call.1} parent=89 // pred_region
          %s1596 = sand.u32 %s126, 1
          %s1597 = scalar_lea.sflag [#allocation5], %s1596
          %s1598 = sand.u32 %s126, 1
          %s1599 = smul.addr %s1598, 128
          %s1600 = scalar_lea.vmem [#allocation4], %s1599
          %1602 = dma.done %s1597, 2048
        $region94: #{tpu_custom_call.1} parent=89 // pred_fallthru
          _
      $region90: #{tpu_custom_call.1} parent=5 // pred_fallthru
        _
    $region6: #{tpu_custom_call.1} parent=1 // loop_footer
      %s17 = sadd.s32 1, %s13
    $region7: #{tpu_custom_call.1} parent=1 // loop_footer_branch
      %12 = sbr.rel target = $region3
    $region8: #{tpu_custom_call.1} parent=1 // loop_exit
      _
    %1603 = vsyncpa [#allocation5], 1
    %s1604 = scalar_lea.sflag [#allocation5], 1
    %1605 = vsyncpa %s1604, 1

</llo_original>
